<compile_context>
chip_gen: v5e
topology: v5e:2x2
jax: 0.10.0
libtpu: 0.0.40
codegen_flags: <defaults>
</compile_context>

<pallas_src>
import functools

import jax
import jax.numpy as jnp
from jax.experimental import pallas as pl
from jax.experimental.pallas import tpu as pltpu


def _round_up(x, m):
    return ((x + m - 1) // m) * m


def _mlp_kernel(*refs, n_hidden_layers):
    """Whole-MLP forward for one batch tile, entirely in VMEM.

    refs (n_hidden_layers > 0): x, w1, b1, wh, bh, wo, bo, out
    refs (n_hidden_layers == 0): x, w1, b1, wo, bo, out

    x  : (TB, IN)        f32 (original dtype; cast to compute dtype in-kernel)
    w1 : (IN, H_P)       bf16    b1 : (1, H_P)      f32
    wh : (L, H_P, H_P)   bf16    bh : (L, 1, H_P)   f32
    wo : (H_P, OUT_P)    bf16    bo : (1, OUT_P)    f32
    out: (TB, OUT_P)     f32 or bf16
    """
    if n_hidden_layers > 0:
        x_ref, w1_ref, b1_ref, wh_ref, bh_ref, wo_ref, bo_ref, out_ref = refs
    else:
        x_ref, w1_ref, b1_ref, wo_ref, bo_ref, out_ref = refs
        wh_ref = bh_ref = None

    cdt = w1_ref.dtype

    # First linear + ReLU (MXU matmul with f32 accumulation; bias/ReLU in f32).
    h = jnp.dot(x_ref[...].astype(cdt), w1_ref[...],
                preferred_element_type=jnp.float32)
    h = jnp.maximum(h + b1_ref[...], 0.0)

    # Hidden linear + ReLU layers (compile-time constant depth -> unrolled).
    for i in range(n_hidden_layers):
        h = jnp.dot(h.astype(cdt), wh_ref[i], preferred_element_type=jnp.float32)
        h = jnp.maximum(h + bh_ref[i], 0.0)

    # Output linear (no activation); lane-dense unmasked store to the padded slab.
    y = jnp.dot(h.astype(cdt), wo_ref[...],
                preferred_element_type=jnp.float32) + bo_ref[...]
    out_ref[...] = y.astype(out_ref.dtype)


def prepare_basenet_params(params, compute_dtype=jnp.bfloat16):
    """One-time pad + cast of the parameter stack (hoisted out of the forward call)."""
    w1, b1 = params["w1"], params["b1"]
    wh, bh = params["wh"], params["bh"]
    wo, bo = params["wo"], params["bo"]

    IN, H = w1.shape
    L = int(wh.shape[0])
    OUT = wo.shape[1]

    LANE = 128
    H_P = _round_up(H, LANE)
    OUT_P = _round_up(OUT, LANE)
    f32 = jnp.float32

    prepared = {
        "w1": jnp.zeros((IN, H_P), compute_dtype).at[:, :H].set(w1.astype(compute_dtype)),
        "b1": jnp.zeros((1, H_P), f32).at[0, :H].set(b1.astype(f32)),
        "wo": jnp.zeros((H_P, OUT_P), compute_dtype).at[:H, :OUT].set(wo.astype(compute_dtype)),
        "bo": jnp.zeros((1, OUT_P), f32).at[0, :OUT].set(bo.astype(f32)),
        "meta": {"IN": IN, "H": H, "OUT": OUT, "L": L, "H_P": H_P, "OUT_P": OUT_P},
    }
    if L > 0:
        prepared["wh"] = (jnp.zeros((L, H_P, H_P), compute_dtype)
                          .at[:, :H, :H].set(wh.astype(compute_dtype)))
        prepared["bh"] = (jnp.zeros((L, 1, H_P), f32)
                          .at[:, 0, :H].set(bh.astype(f32)))
    return prepared


def basenet_forward(x, prepared, *, tile_b=None, out_dtype=jnp.float32):
    """BaseNet MLP forward with a Pallas TPU kernel.

    x: (B, input_size) float32; prepared: output of prepare_basenet_params().
    """
    meta = prepared["meta"]
    IN, OUT, L = meta["IN"], meta["OUT"], meta["L"]
    H_P, OUT_P = meta["H_P"], meta["OUT_P"]

    B = x.shape[0]
    assert x.shape[1] == IN, "x feature dim does not match prepared params"

    # Large batch tiles amortize per-step overhead; keep >= 2 grid steps when B allows
    # it (both v7x TensorCores busy), multiples of 128 (MXU / bf16 tile friendly).
    if tile_b is None:
        tile_b = max(128, min(1024, _round_up(B, 128) // 2))
        tile_b = _round_up(tile_b, 128)
    assert tile_b % 16 == 0, "tile_b must be a multiple of 16 (prefer 128/256 multiples)"

    B_P = _round_up(B, tile_b)
    x_p = x if B_P == B else jnp.pad(x, ((0, B_P - B), (0, 0)))

    operands = [x_p, prepared["w1"], prepared["b1"]]
    if L > 0:
        operands += [prepared["wh"], prepared["bh"]]
    operands += [prepared["wo"], prepared["bo"]]

    kernel = functools.partial(_mlp_kernel, n_hidden_layers=L)

    # Advisory cost estimate for XLA scheduling around the custom call.
    out_itemsize = jnp.dtype(out_dtype).itemsize
    flops = 2 * B_P * (IN * H_P + L * H_P * H_P + H_P * OUT_P)
    bytes_accessed = int(sum(int(a.size) * a.dtype.itemsize for a in operands)
                         + B_P * OUT_P * out_itemsize)
    cost = pl.CostEstimate(flops=int(flops), transcendentals=0,
                           bytes_accessed=bytes_accessed)

    # VMEM budget: single-buffered weights + double-buffered x/out tiles + activations.
    cdt_size = jnp.dtype(prepared["w1"].dtype).itemsize
    w_vmem = ((IN * H_P + L * H_P * H_P + H_P * OUT_P) * cdt_size
              + (L + 1) * 8 * H_P * 4 + 8 * OUT_P * 4)
    act_vmem = (2 * tile_b * IN * x_p.dtype.itemsize
                + 2 * tile_b * OUT_P * out_itemsize
                + 2 * tile_b * H_P * 4)
    vmem_est = w_vmem + act_vmem
    cp_kwargs = {"dimension_semantics": ("parallel",)}
    if vmem_est > 12 * 1024 * 1024:  # above v5e's default 16 MiB scoped-VMEM -> raise it
        cp_kwargs["vmem_limit_bytes"] = int(min(2 * vmem_est, 100 * 1024 * 1024))

    def _call(single_buffer_weights):
        # Constant index maps never re-DMA; Buffered(1) also avoids allocating a
        # second (unused) VMEM buffer for each resident weight/bias.
        pm = {"pipeline_mode": pl.Buffered(1)} if single_buffer_weights else {}

        def wspec(shape):
            return pl.BlockSpec(shape, lambda i: (0,) * len(shape), **pm)

        in_specs = [pl.BlockSpec((tile_b, IN), lambda i: (i, 0)),  # x: batch-tiled only
                    wspec((IN, H_P)), wspec((1, H_P))]
        if L > 0:
            in_specs += [wspec((L, H_P, H_P)), wspec((L, 1, H_P))]
        in_specs += [wspec((H_P, OUT_P)), wspec((1, OUT_P))]

        return pl.pallas_call(
            kernel,
            out_shape=jax.ShapeDtypeStruct((B_P, OUT_P), out_dtype),
            grid_spec=pltpu.PrefetchScalarGridSpec(
                num_scalar_prefetch=0,
                grid=(B_P // tile_b,),
                in_specs=in_specs,
                out_specs=pl.BlockSpec((tile_b, OUT_P), lambda i: (i, 0)),
            ),
            compiler_params=pltpu.CompilerParams(**cp_kwargs),
            cost_estimate=cost,
        )(*operands)

    try:
        out_p = _call(single_buffer_weights=True)
    except Exception:
        # pipeline_mode=pl.Buffered not supported by this JAX build -> default buffering.
        out_p = _call(single_buffer_weights=False)

    # Slice padded batch rows / output lanes off in the wrapper.
    return out_p[:B, :OUT]


def init_basenet_params(key, input_size, hidden_size, depth, output_size=1):
    """Deterministic synthetic init (PyTorch-Linear-style uniform +-1/sqrt(fan_in))."""
    ks = jax.random.split(key, 2 * (depth + 1))

    def lin(kw, kb, fan_in, fan_out):
        bound = 1.0 / jnp.sqrt(jnp.float32(fan_in))
        w = jax.random.uniform(kw, (fan_in, fan_out), jnp.float32, -bound, bound)
        b = jax.random.uniform(kb, (fan_out,), jnp.float32, -bound, bound)
        return w, b

    w1, b1 = lin(ks[0], ks[1], input_size, hidden_size)

    wh_list, bh_list = [], []
    for i in range(1, depth):
        w, b = lin(ks[2 * i], ks[2 * i + 1], hidden_size, hidden_size)
        wh_list.append(w)
        bh_list.append(b)
    if depth > 1:
        wh = jnp.stack(wh_list, axis=0)
        bh = jnp.stack(bh_list, axis=0)
    else:
        wh = jnp.zeros((0, hidden_size, hidden_size), jnp.float32)
        bh = jnp.zeros((0, hidden_size), jnp.float32)

    wo, bo = lin(ks[2 * depth], ks[2 * depth + 1], hidden_size, output_size)
    return {"w1": w1, "b1": b1, "wh": wh, "bh": bh, "wo": wo, "bo": bo}


def basenet_reference(x, params, compute_dtype=jnp.float32):
    """Plain-JAX reference (same operand dtype policy as the kernel when bf16)."""
    def mm(a, w):
        return jnp.dot(a.astype(compute_dtype), w.astype(compute_dtype),
                       preferred_element_type=jnp.float32)

    h = jnp.maximum(mm(x, params["w1"]) + params["b1"], 0.0)
    for i in range(params["wh"].shape[0]):
        h = jnp.maximum(mm(h, params["wh"][i]) + params["bh"][i], 0.0)
    return mm(h, params["wo"]) + params["bo"]


if __name__ == "__main__":
    # Shapes consistent with the module: input_size=16, hidden_size=32, depth=3, output=1.
    input_size, hidden_size, depth, output_size = 16, 32, 3, 1
    batch = 512  # default tile_b=256 -> two parallel grid steps

    key = jax.random.PRNGKey(0)
    kx, kp = jax.random.split(key)
    x = jax.random.normal(kx, (batch, input_size), dtype=jnp.float32)
    params = init_basenet_params(kp, input_size, hidden_size, depth, output_size)

    prepared = prepare_basenet_params(params)          # one-time pad + bf16 cast
    y = jax.block_until_ready(basenet_forward(x, prepared))

    # Reference with the same bf16-operand / f32-accumulate policy -> tight check.
    y_ref = basenet_reference(x, params, compute_dtype=jnp.bfloat16)
    assert y.shape == (batch, output_size)
    assert jnp.allclose(y, y_ref, atol=2e-4, rtol=2e-4), "Pallas output mismatch vs reference"

    # bf16 output writeback path (halves the padded output HBM stream).
    y_bf16 = jax.block_until_ready(
        basenet_forward(x, prepared, out_dtype=jnp.bfloat16)).astype(jnp.float32)
    assert jnp.allclose(y_bf16, y, atol=2e-2, rtol=2e-2), "bf16-output mismatch"

    # depth == 1 edge case: kernel variant without wh/bh operands (no dummy DMA).
    params1 = init_basenet_params(kp, input_size, hidden_size, 1, output_size)
    prepared1 = prepare_basenet_params(params1)
    y1 = jax.block_until_ready(basenet_forward(x, prepared1))
    y1_ref = basenet_reference(x, params1, compute_dtype=jnp.bfloat16)
    assert jnp.allclose(y1, y1_ref, atol=2e-4, rtol=2e-4), "depth=1 mismatch vs reference"

    print("KERNEL_OK")
</pallas_src>

<mosaic_0001>
module attributes {stable_mosaic.version = 11 : i64} {
  func.func @_mlp_kernel(%arg0: i32, %arg1: memref<256x16xf32, #tpu.memory_space<vmem>>, %arg2: memref<16x128xbf16, #tpu.memory_space<vmem>>, %arg3: memref<1x128xf32, #tpu.memory_space<vmem>>, %arg4: memref<2x128x128xbf16, #tpu.memory_space<vmem>>, %arg5: memref<2x1x128xf32, #tpu.memory_space<vmem>>, %arg6: memref<128x128xbf16, #tpu.memory_space<vmem>>, %arg7: memref<1x128xf32, #tpu.memory_space<vmem>>, %arg8: memref<256x128xf32, #tpu.memory_space<vmem>>) attributes {dimension_semantics = [#tpu.dimension_semantics<parallel>], iteration_bounds = array<i64: 2>, scalar_prefetch = 0 : i64, scratch_operands = 0 : i64, tpu.core_type = #tpu.core_type<tc>, window_params = [{transform_indices = @transform_0, window_bounds = array<i64: 256, 16>}, {pipeline_mode = #tpu.pipeline_mode<synchronous>, transform_indices = @transform_1, window_bounds = array<i64: 16, 128>}, {pipeline_mode = #tpu.pipeline_mode<synchronous>, transform_indices = @transform_2, window_bounds = array<i64: 1, 128>}, {pipeline_mode = #tpu.pipeline_mode<synchronous>, transform_indices = @transform_3, window_bounds = array<i64: 2, 128, 128>}, {pipeline_mode = #tpu.pipeline_mode<synchronous>, transform_indices = @transform_4, window_bounds = array<i64: 2, 1, 128>}, {pipeline_mode = #tpu.pipeline_mode<synchronous>, transform_indices = @transform_5, window_bounds = array<i64: 128, 128>}, {pipeline_mode = #tpu.pipeline_mode<synchronous>, transform_indices = @transform_6, window_bounds = array<i64: 1, 128>}, {transform_indices = @transform_7, window_bounds = array<i64: 256, 128>}]} {
    %c0 = arith.constant 0 : index
    %c0_0 = arith.constant 0 : index
    %0 = vector.load %arg1[%c0, %c0_0] : memref<256x16xf32, #tpu.memory_space<vmem>>, vector<256x16xf32>
    %1 = arith.truncf %0 : vector<256x16xf32> to vector<256x16xbf16>
    %c0_1 = arith.constant 0 : index
    %c0_2 = arith.constant 0 : index
    %2 = vector.load %arg2[%c0_1, %c0_2] : memref<16x128xbf16, #tpu.memory_space<vmem>>, vector<16x128xbf16>
    %cst = arith.constant dense<0.000000e+00> : vector<256x128xf32>
    %3 = tpu.matmul %1, %2, %cst {dimension_numbers = #tpu.dot_dimension_numbers<[1], [0], [0], [1], [0, 0, 1, 1], [], []>} : vector<256x16xbf16>, vector<16x128xbf16>, vector<256x128xf32> -> vector<256x128xf32>
    %c0_3 = arith.constant 0 : index
    %c0_4 = arith.constant 0 : index
    %4 = vector.load %arg3[%c0_3, %c0_4] : memref<1x128xf32, #tpu.memory_space<vmem>>, vector<1x128xf32>
    %5 = vector.broadcast %4 : vector<1x128xf32> to vector<256x128xf32>
    %6 = arith.addf %3, %5 : vector<256x128xf32>
    %cst_5 = arith.constant 0.000000e+00 : f32
    %7 = vector.broadcast %cst_5 : f32 to vector<256x128xf32>
    %8 = arith.maximumf %6, %7 : vector<256x128xf32>
    %9 = arith.truncf %8 : vector<256x128xf32> to vector<256x128xbf16>
    %c0_6 = arith.constant 0 : index
    %c0_7 = arith.constant 0 : index
    %c0_8 = arith.constant 0 : index
    %10 = vector.load %arg4[%c0_6, %c0_7, %c0_8] : memref<2x128x128xbf16, #tpu.memory_space<vmem>>, vector<1x128x128xbf16>
    %11 = vector.shape_cast %10 : vector<1x128x128xbf16> to vector<128x128xbf16>
    %cst_9 = arith.constant dense<0.000000e+00> : vector<256x128xf32>
    %12 = tpu.matmul %9, %11, %cst_9 {dimension_numbers = #tpu.dot_dimension_numbers<[1], [0], [0], [1], [0, 0, 1, 1], [], []>} : vector<256x128xbf16>, vector<128x128xbf16>, vector<256x128xf32> -> vector<256x128xf32>
    %c0_10 = arith.constant 0 : index
    %c0_11 = arith.constant 0 : index
    %c0_12 = arith.constant 0 : index
    %13 = vector.load %arg5[%c0_10, %c0_11, %c0_12] : memref<2x1x128xf32, #tpu.memory_space<vmem>>, vector<1x1x128xf32>
    %14 = vector.shape_cast %13 : vector<1x1x128xf32> to vector<1x128xf32>
    %15 = vector.broadcast %14 : vector<1x128xf32> to vector<256x128xf32>
    %16 = arith.addf %12, %15 : vector<256x128xf32>
    %cst_13 = arith.constant 0.000000e+00 : f32
    %17 = vector.broadcast %cst_13 : f32 to vector<256x128xf32>
    %18 = arith.maximumf %16, %17 : vector<256x128xf32>
    %19 = arith.truncf %18 : vector<256x128xf32> to vector<256x128xbf16>
    %c1 = arith.constant 1 : index
    %c0_14 = arith.constant 0 : index
    %c0_15 = arith.constant 0 : index
    %20 = vector.load %arg4[%c1, %c0_14, %c0_15] : memref<2x128x128xbf16, #tpu.memory_space<vmem>>, vector<1x128x128xbf16>
    %21 = vector.shape_cast %20 : vector<1x128x128xbf16> to vector<128x128xbf16>
    %cst_16 = arith.constant dense<0.000000e+00> : vector<256x128xf32>
    %22 = tpu.matmul %19, %21, %cst_16 {dimension_numbers = #tpu.dot_dimension_numbers<[1], [0], [0], [1], [0, 0, 1, 1], [], []>} : vector<256x128xbf16>, vector<128x128xbf16>, vector<256x128xf32> -> vector<256x128xf32>
    %c1_17 = arith.constant 1 : index
    %c0_18 = arith.constant 0 : index
    %c0_19 = arith.constant 0 : index
    %23 = vector.load %arg5[%c1_17, %c0_18, %c0_19] : memref<2x1x128xf32, #tpu.memory_space<vmem>>, vector<1x1x128xf32>
    %24 = vector.shape_cast %23 : vector<1x1x128xf32> to vector<1x128xf32>
    %25 = vector.broadcast %24 : vector<1x128xf32> to vector<256x128xf32>
    %26 = arith.addf %22, %25 : vector<256x128xf32>
    %cst_20 = arith.constant 0.000000e+00 : f32
    %27 = vector.broadcast %cst_20 : f32 to vector<256x128xf32>
    %28 = arith.maximumf %26, %27 : vector<256x128xf32>
    %29 = arith.truncf %28 : vector<256x128xf32> to vector<256x128xbf16>
    %c0_21 = arith.constant 0 : index
    %c0_22 = arith.constant 0 : index
    %30 = vector.load %arg6[%c0_21, %c0_22] : memref<128x128xbf16, #tpu.memory_space<vmem>>, vector<128x128xbf16>
    %cst_23 = arith.constant dense<0.000000e+00> : vector<256x128xf32>
    %31 = tpu.matmul %29, %30, %cst_23 {dimension_numbers = #tpu.dot_dimension_numbers<[1], [0], [0], [1], [0, 0, 1, 1], [], []>} : vector<256x128xbf16>, vector<128x128xbf16>, vector<256x128xf32> -> vector<256x128xf32>
    %c0_24 = arith.constant 0 : index
    %c0_25 = arith.constant 0 : index
    %32 = vector.load %arg7[%c0_24, %c0_25] : memref<1x128xf32, #tpu.memory_space<vmem>>, vector<1x128xf32>
    %33 = vector.broadcast %32 : vector<1x128xf32> to vector<256x128xf32>
    %34 = arith.addf %31, %33 : vector<256x128xf32>
    %c0_26 = arith.constant 0 : index
    %c0_27 = arith.constant 0 : index
    %35 = vector.load %arg8[%c0_26, %c0_27] : memref<256x128xf32, #tpu.memory_space<vmem>>, vector<256x128xf32>
    tpu.vector_store %arg8[%c0_26, %c0_27], %34 {strides = array<i32>} : memref<256x128xf32, #tpu.memory_space<vmem>>, vector<256x128xf32>,
    return
  }
  func.func @transform_0(%arg0: i32) -> (i32, i32) {
    %c0_i32 = arith.constant 0 : i32
    %c0_i32_0 = arith.constant 0 : i32
    return %arg0, %c0_i32 : i32, i32
  }
  func.func @transform_1(%arg0: i32) -> (i32, i32) {
    %c0_i32 = arith.constant 0 : i32
    %c0_i32_0 = arith.constant 0 : i32
    %c0_i32_1 = arith.constant 0 : i32
    return %c0_i32, %c0_i32_0 : i32, i32
  }
  func.func @transform_2(%arg0: i32) -> (i32, i32) {
    %c0_i32 = arith.constant 0 : i32
    %c0_i32_0 = arith.constant 0 : i32
    %c0_i32_1 = arith.constant 0 : i32
    return %c0_i32, %c0_i32_0 : i32, i32
  }
  func.func @transform_3(%arg0: i32) -> (i32, i32, i32) {
    %c0_i32 = arith.constant 0 : i32
    %c0_i32_0 = arith.constant 0 : i32
    %c0_i32_1 = arith.constant 0 : i32
    %c0_i32_2 = arith.constant 0 : i32
    return %c0_i32, %c0_i32_0, %c0_i32_1 : i32, i32, i32
  }
  func.func @transform_4(%arg0: i32) -> (i32, i32, i32) {
    %c0_i32 = arith.constant 0 : i32
    %c0_i32_0 = arith.constant 0 : i32
    %c0_i32_1 = arith.constant 0 : i32
    %c0_i32_2 = arith.constant 0 : i32
    return %c0_i32, %c0_i32_0, %c0_i32_1 : i32, i32, i32
  }
  func.func @transform_5(%arg0: i32) -> (i32, i32) {
    %c0_i32 = arith.constant 0 : i32
    %c0_i32_0 = arith.constant 0 : i32
    %c0_i32_1 = arith.constant 0 : i32
    return %c0_i32, %c0_i32_0 : i32, i32
  }
  func.func @transform_6(%arg0: i32) -> (i32, i32) {
    %c0_i32 = arith.constant 0 : i32
    %c0_i32_0 = arith.constant 0 : i32
    %c0_i32_1 = arith.constant 0 : i32
    return %c0_i32, %c0_i32_0 : i32, i32
  }
  func.func @transform_7(%arg0: i32) -> (i32, i32) {
    %c0_i32 = arith.constant 0 : i32
    %c0_i32_0 = arith.constant 0 : i32
    return %arg0, %c0_i32 : i32, i32
  }
}

module attributes {stable_mosaic.version = 11 : i64} {
  func.func @_mlp_kernel(%arg0: i32, %arg1: memref<256x16xf32, #tpu.memory_space<vmem>>, %arg2: memref<16x128xbf16, #tpu.memory_space<vmem>>, %arg3: memref<1x128xf32, #tpu.memory_space<vmem>>, %arg4: memref<2x128x128xbf16, #tpu.memory_space<vmem>>, %arg5: memref<2x1x128xf32, #tpu.memory_space<vmem>>, %arg6: memref<128x128xbf16, #tpu.memory_space<vmem>>, %arg7: memref<1x128xf32, #tpu.memory_space<vmem>>, %arg8: memref<256x128xf32, #tpu.memory_space<vmem>>) attributes {dimension_semantics = [#tpu.dimension_semantics<parallel>], iteration_bounds = array<i64: 2>, scalar_prefetch = 0 : i64, scratch_operands = 0 : i64, tpu.core_type = #tpu.core_type<tc>, window_params = [{transform_indices = @transform_0, window_bounds = array<i64: 256, 16>}, {pipeline_mode = #tpu.pipeline_mode<synchronous>, transform_indices = @transform_1, window_bounds = array<i64: 16, 128>}, {pipeline_mode = #tpu.pipeline_mode<synchronous>, transform_indices = @transform_2, window_bounds = array<i64: 1, 128>}, {pipeline_mode = #tpu.pipeline_mode<synchronous>, transform_indices = @transform_3, window_bounds = array<i64: 2, 128, 128>}, {pipeline_mode = #tpu.pipeline_mode<synchronous>, transform_indices = @transform_4, window_bounds = array<i64: 2, 1, 128>}, {pipeline_mode = #tpu.pipeline_mode<synchronous>, transform_indices = @transform_5, window_bounds = array<i64: 128, 128>}, {pipeline_mode = #tpu.pipeline_mode<synchronous>, transform_indices = @transform_6, window_bounds = array<i64: 1, 128>}, {transform_indices = @transform_7, window_bounds = array<i64: 256, 128>}]} {
    %c0 = arith.constant 0 : index
    %c0_0 = arith.constant 0 : index
    %0 = vector.load %arg1[%c0, %c0_0] : memref<256x16xf32, #tpu.memory_space<vmem>>, vector<256x16xf32>
    %1 = arith.truncf %0 : vector<256x16xf32> to vector<256x16xbf16>
    %c0_1 = arith.constant 0 : index
    %c0_2 = arith.constant 0 : index
    %2 = vector.load %arg2[%c0_1, %c0_2] : memref<16x128xbf16, #tpu.memory_space<vmem>>, vector<16x128xbf16>
    %cst = arith.constant dense<0.000000e+00> : vector<256x128xf32>
    %3 = tpu.matmul %1, %2, %cst {dimension_numbers = #tpu.dot_dimension_numbers<[1], [0], [0], [1], [0, 0, 1, 1], [], []>} : vector<256x16xbf16>, vector<16x128xbf16>, vector<256x128xf32> -> vector<256x128xf32>
    %c0_3 = arith.constant 0 : index
    %c0_4 = arith.constant 0 : index
    %4 = vector.load %arg3[%c0_3, %c0_4] : memref<1x128xf32, #tpu.memory_space<vmem>>, vector<1x128xf32>
    %5 = vector.broadcast %4 : vector<1x128xf32> to vector<256x128xf32>
    %6 = arith.addf %3, %5 : vector<256x128xf32>
    %cst_5 = arith.constant 0.000000e+00 : f32
    %7 = vector.broadcast %cst_5 : f32 to vector<256x128xf32>
    %8 = arith.maximumf %6, %7 : vector<256x128xf32>
    %9 = arith.truncf %8 : vector<256x128xf32> to vector<256x128xbf16>
    %c0_6 = arith.constant 0 : index
    %c0_7 = arith.constant 0 : index
    %c0_8 = arith.constant 0 : index
    %10 = vector.load %arg4[%c0_6, %c0_7, %c0_8] : memref<2x128x128xbf16, #tpu.memory_space<vmem>>, vector<1x128x128xbf16>
    %11 = vector.shape_cast %10 : vector<1x128x128xbf16> to vector<128x128xbf16>
    %cst_9 = arith.constant dense<0.000000e+00> : vector<256x128xf32>
    %12 = tpu.matmul %9, %11, %cst_9 {dimension_numbers = #tpu.dot_dimension_numbers<[1], [0], [0], [1], [0, 0, 1, 1], [], []>} : vector<256x128xbf16>, vector<128x128xbf16>, vector<256x128xf32> -> vector<256x128xf32>
    %c0_10 = arith.constant 0 : index
    %c0_11 = arith.constant 0 : index
    %c0_12 = arith.constant 0 : index
    %13 = vector.load %arg5[%c0_10, %c0_11, %c0_12] : memref<2x1x128xf32, #tpu.memory_space<vmem>>, vector<1x1x128xf32>
    %14 = vector.shape_cast %13 : vector<1x1x128xf32> to vector<1x128xf32>
    %15 = vector.broadcast %14 : vector<1x128xf32> to vector<256x128xf32>
    %16 = arith.addf %12, %15 : vector<256x128xf32>
    %cst_13 = arith.constant 0.000000e+00 : f32
    %17 = vector.broadcast %cst_13 : f32 to vector<256x128xf32>
    %18 = arith.maximumf %16, %17 : vector<256x128xf32>
    %19 = arith.truncf %18 : vector<256x128xf32> to vector<256x128xbf16>
    %c1 = arith.constant 1 : index
    %c0_14 = arith.constant 0 : index
    %c0_15 = arith.constant 0 : index
    %20 = vector.load %arg4[%c1, %c0_14, %c0_15] : memref<2x128x128xbf16, #tpu.memory_space<vmem>>, vector<1x128x128xbf16>
    %21 = vector.shape_cast %20 : vector<1x128x128xbf16> to vector<128x128xbf16>
    %cst_16 = arith.constant dense<0.000000e+00> : vector<256x128xf32>
    %22 = tpu.matmul %19, %21, %cst_16 {dimension_numbers = #tpu.dot_dimension_numbers<[1], [0], [0], [1], [0, 0, 1, 1], [], []>} : vector<256x128xbf16>, vector<128x128xbf16>, vector<256x128xf32> -> vector<256x128xf32>
    %c1_17 = arith.constant 1 : index
    %c0_18 = arith.constant 0 : index
    %c0_19 = arith.constant 0 : index
    %23 = vector.load %arg5[%c1_17, %c0_18, %c0_19] : memref<2x1x128xf32, #tpu.memory_space<vmem>>, vector<1x1x128xf32>
    %24 = vector.shape_cast %23 : vector<1x1x128xf32> to vector<1x128xf32>
    %25 = vector.broadcast %24 : vector<1x128xf32> to vector<256x128xf32>
    %26 = arith.addf %22, %25 : vector<256x128xf32>
    %cst_20 = arith.constant 0.000000e+00 : f32
    %27 = vector.broadcast %cst_20 : f32 to vector<256x128xf32>
    %28 = arith.maximumf %26, %27 : vector<256x128xf32>
    %29 = arith.truncf %28 : vector<256x128xf32> to vector<256x128xbf16>
    %c0_21 = arith.constant 0 : index
    %c0_22 = arith.constant 0 : index
    %30 = vector.load %arg6[%c0_21, %c0_22] : memref<128x128xbf16, #tpu.memory_space<vmem>>, vector<128x128xbf16>
    %cst_23 = arith.constant dense<0.000000e+00> : vector<256x128xf32>
    %31 = tpu.matmul %29, %30, %cst_23 {dimension_numbers = #tpu.dot_dimension_numbers<[1], [0], [0], [1], [0, 0, 1, 1], [], []>} : vector<256x128xbf16>, vector<128x128xbf16>, vector<256x128xf32> -> vector<256x128xf32>
    %c0_24 = arith.constant 0 : index
    %c0_25 = arith.constant 0 : index
    %32 = vector.load %arg7[%c0_24, %c0_25] : memref<1x128xf32, #tpu.memory_space<vmem>>, vector<1x128xf32>
    %33 = vector.broadcast %32 : vector<1x128xf32> to vector<256x128xf32>
    %34 = arith.addf %31, %33 : vector<256x128xf32>
    %c0_26 = arith.constant 0 : index
    %c0_27 = arith.constant 0 : index
    %35 = vector.load %arg8[%c0_26, %c0_27] : memref<256x128xf32, #tpu.memory_space<vmem>>, vector<256x128xf32>
    tpu.vector_store %arg8[%c0_26, %c0_27], %34 {strides = array<i32>} : memref<256x128xf32, #tpu.memory_space<vmem>>, vector<256x128xf32>,
    return
  }
  func.func @transform_0(%arg0: i32) -> (i32, i32) {
    %c0_i32 = arith.constant 0 : i32
    %c0_i32_0 = arith.constant 0 : i32
    return %arg0, %c0_i32 : i32, i32
  }
  func.func @transform_1(%arg0: i32) -> (i32, i32) {
    %c0_i32 = arith.constant 0 : i32
    %c0_i32_0 = arith.constant 0 : i32
    %c0_i32_1 = arith.constant 0 : i32
    return %c0_i32, %c0_i32_0 : i32, i32
  }
  func.func @transform_2(%arg0: i32) -> (i32, i32) {
    %c0_i32 = arith.constant 0 : i32
    %c0_i32_0 = arith.constant 0 : i32
    %c0_i32_1 = arith.constant 0 : i32
    return %c0_i32, %c0_i32_0 : i32, i32
  }
  func.func @transform_3(%arg0: i32) -> (i32, i32, i32) {
    %c0_i32 = arith.constant 0 : i32
    %c0_i32_0 = arith.constant 0 : i32
    %c0_i32_1 = arith.constant 0 : i32
    %c0_i32_2 = arith.constant 0 : i32
    return %c0_i32, %c0_i32_0, %c0_i32_1 : i32, i32, i32
  }
  func.func @transform_4(%arg0: i32) -> (i32, i32, i32) {
    %c0_i32 = arith.constant 0 : i32
    %c0_i32_0 = arith.constant 0 : i32
    %c0_i32_1 = arith.constant 0 : i32
    %c0_i32_2 = arith.constant 0 : i32
    return %c0_i32, %c0_i32_0, %c0_i32_1 : i32, i32, i32
  }
  func.func @transform_5(%arg0: i32) -> (i32, i32) {
    %c0_i32 = arith.constant 0 : i32
    %c0_i32_0 = arith.constant 0 : i32
    %c0_i32_1 = arith.constant 0 : i32
    return %c0_i32, %c0_i32_0 : i32, i32
  }
  func.func @transform_6(%arg0: i32) -> (i32, i32) {
    %c0_i32 = arith.constant 0 : i32
    %c0_i32_0 = arith.constant 0 : i32
    %c0_i32_1 = arith.constant 0 : i32
    return %c0_i32, %c0_i32_0 : i32, i32
  }
  func.func @transform_7(%arg0: i32) -> (i32, i32) {
    %c0_i32 = arith.constant 0 : i32
    %c0_i32_0 = arith.constant 0 : i32
    return %arg0, %c0_i32 : i32, i32
  }
}

</mosaic_0001>

<llo_original>
// kernel: tpu_custom_call.1
$region0: #{tpu_custom_call.1}
  #allocation0 [shape = 'u32[]', space=smem, size = 0x4, offset = 0x4, fixed_abs, tag = 'smem constant byte address 0x4 - core index']
  #allocation1 [shape = 'u32[72,128]{1,0:T(1,128)}', space=vmem, size = 0x9000, scoped, tag = 'internal scratch']
  %s0 = inlined_call_operand.vmem [shape: f32[512,16], index: 0, kind: input, shape index: {}]
  %s1 = inlined_call_operand.vmem [shape: bf16[16,128], index: 1, kind: input, shape index: {}]
  %s2 = inlined_call_operand.vmem [shape: f32[1,128], index: 2, kind: input, shape index: {}]
  %s3 = inlined_call_operand.vmem [shape: bf16[2,128,128], index: 3, kind: input, shape index: {}]
  %s4 = inlined_call_operand.vmem [shape: f32[2,1,128], index: 4, kind: input, shape index: {}]
  %s5 = inlined_call_operand.vmem [shape: bf16[128,128], index: 5, kind: input, shape index: {}]
  %s6 = inlined_call_operand.vmem [shape: f32[1,128], index: 6, kind: input, shape index: {}]
  %s7 = inlined_call_operand.hbm [shape: f32[512,128], index: 7, kind: output, shape index: {}]
  %s8 = sld [smem:[#allocation0]]
  $region61: #{tpu_custom_call.1} parent=0
    _
  %s10 = ssub.s32 1, %s8
  %s11 = scalar_select 0, %s10, %s8
  $region1: #{tpu_custom_call.1} parent=0
    #allocation2 [shape = 'u8[262144]{0}', space=vmem, size = 0x40000, scoped, tag = 'output window, operand 0']
    #allocation3 [shape = 's32[2]{0}', space=sflag, size = 0x8, scoped, tag = 'scoped memory for tpu_custom_call.1']
    %12 = vsyncpa [#allocation3], 0
    %s13 = scalar_lea.sflag [#allocation3], 1
    %14 = vsyncpa %s13, 0
    loop: start=0, step=1, limit=4
    $region2: #{tpu_custom_call.1} parent=1 // loop_pre_header
      _
    $region3: #{tpu_custom_call.1} parent=1 // loop_header
      %s16 = sphi 0, %s20
      %p17 = scmp.ge.s32.totalorder %s16, 4
      %s26 = sphi 0, %s28
      %s29 = sphi 0, %s26
      %s30 = sphi 0, %s29
      %s46 = sphi 0, %s30
      %s50 = sphi 0, %s50
      %s52 = sphi 0, %s50
      %s53 = sphi 0, %s52
      %s67 = sphi 0, %s53
      %s71 = sphi 0, %s71
      %s73 = sphi 0, %s71
      %s74 = sphi 0, %s73
      %s88 = sphi 0, %s74
      %s92 = sphi 0, %s92
      %s94 = sphi 0, %s92
      %s95 = sphi 0, %s94
      %s109 = sphi 0, %s95
      %s113 = sphi 0, %s113
      %s115 = sphi 0, %s113
      %s116 = sphi 0, %s115
      %s130 = sphi 0, %s116
      %s134 = sphi 0, %s134
      %s136 = sphi 0, %s134
      %s137 = sphi 0, %s136
      %s151 = sphi 0, %s137
      %s155 = sphi 0, %s155
      %s157 = sphi 0, %s155
      %s158 = sphi 0, %s157
      %s172 = sphi 0, %s158
      %s178 = sphi 0, %s180
      %s181 = sphi 0, %s178
      %s182 = sphi 0, %s181
      %s198 = sphi 0, %s182
    $region4: #{tpu_custom_call.1} parent=1 // loop_header_branch
      %19 = sbr.rel (%p17) target = $region8
    $region5: #{tpu_custom_call.1} parent=1 // loop_body
      %s21 = ssub.s32 %s16, 1
      %s22 = ssub.s32 %s16, 2
      %s23 = sadd.s32 %s16, 1
      %s24 = ssub.s32 %s16, %s23
      %p25 = scmp.eq.s32.totalorder %s24, 0
      %s27 = sadd.s32 %s26, 1
      %s28 = scalar_select %p25, %s26, %s27
      %p31 = pneg %p25
      %p32 = scmp.eq.s32.totalorder %s16, 1
      %p33 = por %p31, %p32
      %p34 = scmp.ne.s32.totalorder %s26, %s29
      %p35 = scmp.eq.s32.totalorder %s16, 0
      %p36 = por %p34, %p35
      %p37 = scmp.ne.s32.totalorder %s26, %s29
      %p38 = scmp.eq.s32.totalorder %s21, 1
      %p39 = por %p37, %p38
      %p40 = scmp.ne.s32.totalorder %s29, %s30
      %p41 = scmp.eq.s32.totalorder %s21, 0
      %p42 = por %p40, %p41
      %p43 = scmp.ne.s32.totalorder %s29, %s30
      %p44 = scmp.eq.s32.totalorder %s22, 1
      %p45 = por %p43, %p44
      %p47 = scmp.ne.s32.totalorder %s30, %s46
      %p48 = scmp.eq.s32.totalorder %s22, 0
      %p49 = por %p47, %p48
      %s51 = sadd.s32 %s50, 1
      %p54 = scmp.eq.s32.totalorder %s16, 1
      %p55 = scmp.ne.s32.totalorder %s50, %s52
      %p56 = scmp.eq.s32.totalorder %s16, 0
      %p57 = por %p55, %p56
      %p58 = scmp.ne.s32.totalorder %s50, %s52
      %p59 = scmp.eq.s32.totalorder %s21, 1
      %p60 = por %p58, %p59
      %p61 = scmp.ne.s32.totalorder %s52, %s53
      %p62 = scmp.eq.s32.totalorder %s21, 0
      %p63 = por %p61, %p62
      %p64 = scmp.ne.s32.totalorder %s52, %s53
      %p65 = scmp.eq.s32.totalorder %s22, 1
      %p66 = por %p64, %p65
      %p68 = scmp.ne.s32.totalorder %s53, %s67
      %p69 = scmp.eq.s32.totalorder %s22, 0
      %p70 = por %p68, %p69
      %s72 = sadd.s32 %s71, 1
      %p75 = scmp.eq.s32.totalorder %s16, 1
      %p76 = scmp.ne.s32.totalorder %s71, %s73
      %p77 = scmp.eq.s32.totalorder %s16, 0
      %p78 = por %p76, %p77
      %p79 = scmp.ne.s32.totalorder %s71, %s73
      %p80 = scmp.eq.s32.totalorder %s21, 1
      %p81 = por %p79, %p80
      %p82 = scmp.ne.s32.totalorder %s73, %s74
      %p83 = scmp.eq.s32.totalorder %s21, 0
      %p84 = por %p82, %p83
      %p85 = scmp.ne.s32.totalorder %s73, %s74
      %p86 = scmp.eq.s32.totalorder %s22, 1
      %p87 = por %p85, %p86
      %p89 = scmp.ne.s32.totalorder %s74, %s88
      %p90 = scmp.eq.s32.totalorder %s22, 0
      %p91 = por %p89, %p90
      %s93 = sadd.s32 %s92, 1
      %p96 = scmp.eq.s32.totalorder %s16, 1
      %p97 = scmp.ne.s32.totalorder %s92, %s94
      %p98 = scmp.eq.s32.totalorder %s16, 0
      %p99 = por %p97, %p98
      %p100 = scmp.ne.s32.totalorder %s92, %s94
      %p101 = scmp.eq.s32.totalorder %s21, 1
      %p102 = por %p100, %p101
      %p103 = scmp.ne.s32.totalorder %s94, %s95
      %p104 = scmp.eq.s32.totalorder %s21, 0
      %p105 = por %p103, %p104
      %p106 = scmp.ne.s32.totalorder %s94, %s95
      %p107 = scmp.eq.s32.totalorder %s22, 1
      %p108 = por %p106, %p107
      %p110 = scmp.ne.s32.totalorder %s95, %s109
      %p111 = scmp.eq.s32.totalorder %s22, 0
      %p112 = por %p110, %p111
      %s114 = sadd.s32 %s113, 1
      %p117 = scmp.eq.s32.totalorder %s16, 1
      %p118 = scmp.ne.s32.totalorder %s113, %s115
      %p119 = scmp.eq.s32.totalorder %s16, 0
      %p120 = por %p118, %p119
      %p121 = scmp.ne.s32.totalorder %s113, %s115
      %p122 = scmp.eq.s32.totalorder %s21, 1
      %p123 = por %p121, %p122
      %p124 = scmp.ne.s32.totalorder %s115, %s116
      %p125 = scmp.eq.s32.totalorder %s21, 0
      %p126 = por %p124, %p125
      %p127 = scmp.ne.s32.totalorder %s115, %s116
      %p128 = scmp.eq.s32.totalorder %s22, 1
      %p129 = por %p127, %p128
      %p131 = scmp.ne.s32.totalorder %s116, %s130
      %p132 = scmp.eq.s32.totalorder %s22, 0
      %p133 = por %p131, %p132
      %s135 = sadd.s32 %s134, 1
      %p138 = scmp.eq.s32.totalorder %s16, 1
      %p139 = scmp.ne.s32.totalorder %s134, %s136
      %p140 = scmp.eq.s32.totalorder %s16, 0
      %p141 = por %p139, %p140
      %p142 = scmp.ne.s32.totalorder %s134, %s136
      %p143 = scmp.eq.s32.totalorder %s21, 1
      %p144 = por %p142, %p143
      %p145 = scmp.ne.s32.totalorder %s136, %s137
      %p146 = scmp.eq.s32.totalorder %s21, 0
      %p147 = por %p145, %p146
      %p148 = scmp.ne.s32.totalorder %s136, %s137
      %p149 = scmp.eq.s32.totalorder %s22, 1
      %p150 = por %p148, %p149
      %p152 = scmp.ne.s32.totalorder %s137, %s151
      %p153 = scmp.eq.s32.totalorder %s22, 0
      %p154 = por %p152, %p153
      %s156 = sadd.s32 %s155, 1
      %p159 = scmp.eq.s32.totalorder %s16, 1
      %p160 = scmp.ne.s32.totalorder %s155, %s157
      %p161 = scmp.eq.s32.totalorder %s16, 0
      %p162 = por %p160, %p161
      %p163 = scmp.ne.s32.totalorder %s155, %s157
      %p164 = scmp.eq.s32.totalorder %s21, 1
      %p165 = por %p163, %p164
      %p166 = scmp.ne.s32.totalorder %s157, %s158
      %p167 = scmp.eq.s32.totalorder %s21, 0
      %p168 = por %p166, %p167
      %p169 = scmp.ne.s32.totalorder %s157, %s158
      %p170 = scmp.eq.s32.totalorder %s22, 1
      %p171 = por %p169, %p170
      %p173 = scmp.ne.s32.totalorder %s158, %s172
      %p174 = scmp.eq.s32.totalorder %s22, 0
      %p175 = por %p173, %p174
      %s176 = ssub.s32 %s16, %s23
      %p177 = scmp.eq.s32.totalorder %s176, 0
      %s179 = sadd.s32 %s178, 1
      %s180 = scalar_select %p177, %s178, %s179
      %p183 = pneg %p177
      %p184 = scmp.eq.s32.totalorder %s16, 1
      %p185 = por %p183, %p184
      %p186 = scmp.ne.s32.totalorder %s178, %s181
      %p187 = scmp.eq.s32.totalorder %s16, 0
      %p188 = por %p186, %p187
      %p189 = scmp.ne.s32.totalorder %s178, %s181
      %p190 = scmp.eq.s32.totalorder %s21, 1
      %p191 = por %p189, %p190
      %p192 = scmp.ne.s32.totalorder %s181, %s182
      %p193 = scmp.eq.s32.totalorder %s21, 0
      %p194 = por %p192, %p193
      %p195 = scmp.ne.s32.totalorder %s181, %s182
      %p196 = scmp.eq.s32.totalorder %s22, 1
      %p197 = por %p195, %p196
      %p199 = scmp.ne.s32.totalorder %s182, %s198
      %p200 = scmp.eq.s32.totalorder %s22, 0
      %p201 = por %p199, %p200
      %p202 = scmp.le.s32.totalorder 1, %s16
      %p203 = scmp.lt.s32.totalorder %s16, 3
      %p204 = pnand %p202, %p203
      %p205 = pneg %p204
      // Predicated region
      $region9: #{tpu_custom_call.1} parent=5 // pred_check
        _
      $region10: #{tpu_custom_call.1} parent=5 // pred_check_branch
        %207 = sbr.rel (%p204) target = $region12
      $region11: #{tpu_custom_call.1} parent=5 // pred_region
        %s208 = ssub.s32 %s16, 1
        // Predicated region
        $region13: #{tpu_custom_call.1} parent=11 // pred_check
          %p209 = pneg %p63
        $region14: #{tpu_custom_call.1} parent=11 // pred_check_branch
          %211 = sbr.rel (%p209) target = $region16
        $region15: #{tpu_custom_call.1} parent=11 // pred_region
          _
        $region16: #{tpu_custom_call.1} parent=11 // pred_fallthru
          _
        // Predicated region
        $region17: #{tpu_custom_call.1} parent=11 // pred_check
          %p212 = pneg %p84
        $region18: #{tpu_custom_call.1} parent=11 // pred_check_branch
          %214 = sbr.rel (%p212) target = $region20
        $region19: #{tpu_custom_call.1} parent=11 // pred_region
          _
        $region20: #{tpu_custom_call.1} parent=11 // pred_fallthru
          _
        // Predicated region
        $region21: #{tpu_custom_call.1} parent=11 // pred_check
          %p215 = pneg %p105
        $region22: #{tpu_custom_call.1} parent=11 // pred_check_branch
          %217 = sbr.rel (%p215) target = $region24
        $region23: #{tpu_custom_call.1} parent=11 // pred_region
          _
        $region24: #{tpu_custom_call.1} parent=11 // pred_fallthru
          _
        // Predicated region
        $region25: #{tpu_custom_call.1} parent=11 // pred_check
          %p218 = pneg %p126
        $region26: #{tpu_custom_call.1} parent=11 // pred_check_branch
          %220 = sbr.rel (%p218) target = $region28
        $region27: #{tpu_custom_call.1} parent=11 // pred_region
          _
        $region28: #{tpu_custom_call.1} parent=11 // pred_fallthru
          _
        // Predicated region
        $region29: #{tpu_custom_call.1} parent=11 // pred_check
          %p221 = pneg %p147
        $region30: #{tpu_custom_call.1} parent=11 // pred_check_branch
          %223 = sbr.rel (%p221) target = $region32
        $region31: #{tpu_custom_call.1} parent=11 // pred_region
          _
        $region32: #{tpu_custom_call.1} parent=11 // pred_fallthru
          _
        // Predicated region
        $region33: #{tpu_custom_call.1} parent=11 // pred_check
          %p224 = pneg %p168
        $region34: #{tpu_custom_call.1} parent=11 // pred_check_branch
          %226 = sbr.rel (%p224) target = $region36
        $region35: #{tpu_custom_call.1} parent=11 // pred_region
          _
        $region36: #{tpu_custom_call.1} parent=11 // pred_fallthru
          _
      $region12: #{tpu_custom_call.1} parent=5 // pred_fallthru
        _
      %p227 = scmp.lt.s32.totalorder %s16, 2
      // Predicated region
      $region37: #{tpu_custom_call.1} parent=5 // pred_check
        %p228 = pneg %p227
      $region38: #{tpu_custom_call.1} parent=5 // pred_check_branch
        %230 = sbr.rel (%p228) target = $region40
      $region39: #{tpu_custom_call.1} parent=5 // pred_region
        // Predicated region
        $region41: #{tpu_custom_call.1} parent=39 // pred_check
          %p231 = pneg %p36
        $region42: #{tpu_custom_call.1} parent=39 // pred_check_branch
          %233 = sbr.rel (%p231) target = $region44
        $region43: #{tpu_custom_call.1} parent=39 // pred_region
          %s234 = smul.u32 32, %s16
          %p235 = scmp.lt.s32.totalorder %s234, 63
          %s236 = scalar_select %p235, %s234, 63
          %s237 = smul.addr %s236, 8
          %s238 = scalar_lea.vmem %s0, %s237
          %s239 = smul.u32 32, %s16
        $region44: #{tpu_custom_call.1} parent=39 // pred_fallthru
          _
      $region40: #{tpu_custom_call.1} parent=5 // pred_fallthru
        _
      %p240 = scmp.le.s32.totalorder 1, %s16
      %p241 = scmp.lt.s32.totalorder %s16, 3
      %p242 = pnand %p240, %p241
      %p243 = pneg %p242
      // Predicated region
      $region45: #{tpu_custom_call.1} parent=5 // pred_check
        _
      $region46: #{tpu_custom_call.1} parent=5 // pred_check_branch
        %245 = sbr.rel (%p242) target = $region48
      $region47: #{tpu_custom_call.1} parent=5 // pred_region
        %s246 = ssub.s32 %s16, 1
        %s247 = smul.u32 32, %s21
        %p248 = scmp.lt.s32.totalorder %s247, 63
        %s249 = scalar_select %p248, %s247, 63
        %s250 = smul.addr %s249, 8
        %s251 = scalar_lea.vmem %s0, %s250
        %p252 = pneg %p42
        %p253 = pneg %p39
        %p254 = pneg %p63
        %p255 = pneg %p60
        %p256 = pneg %p84
        %p257 = pneg %p81
        %p258 = pneg %p105
        %p259 = pneg %p102
        %p260 = pneg %p126
        %p261 = pneg %p123
        %p262 = pneg %p147
        %p263 = pneg %p144
        %p264 = pneg %p168
        %p265 = pneg %p165
        %p266 = pneg %p194
        %p267 = pneg %p191
        %s268 = sand.u32 %s181, 1
        %s269 = scalar_lea.sflag [#allocation3], %s268
        %s270 = sand.u32 %s181, 1
        %s271 = smul.addr %s270, 256
        %s272 = scalar_lea.vmem [#allocation2], %s271
        %s273 = smul.u32 32, %s21
        %p274 = scmp.lt.s32.totalorder %s273, 63
        %s275 = scalar_select %p274, %s273, 63
        %s276 = smul.addr %s275, 8
        %s277 = scalar_lea.vmem %s0, %s276
        %s278 = smul.u32 32, %s21
        %s279 = smul.u32 32, %s21
        %v281 = vld [vmem:[%s277] sm:$0xff]
        %v282 = vld [vmem:[%s277 + $0x8] sm:$0xff]
        %v283 = vld [vmem:[%s277 + $0x10] sm:$0xff]
        %v284 = vld [vmem:[%s277 + $0x18] sm:$0xff]
        %v285 = vld [vmem:[%s277 + $0x20] sm:$0xff]
        %v286 = vld [vmem:[%s277 + $0x28] sm:$0xff]
        %v287 = vld [vmem:[%s277 + $0x30] sm:$0xff]
        %v288 = vld [vmem:[%s277 + $0x38] sm:$0xff]
        %v289 = vld [vmem:[%s277 + $0x40] sm:$0xff]
        %v290 = vld [vmem:[%s277 + $0x48] sm:$0xff]
        %v291 = vld [vmem:[%s277 + $0x50] sm:$0xff]
        %v292 = vld [vmem:[%s277 + $0x58] sm:$0xff]
        %v293 = vld [vmem:[%s277 + $0x60] sm:$0xff]
        %v294 = vld [vmem:[%s277 + $0x68] sm:$0xff]
        %v295 = vld [vmem:[%s277 + $0x70] sm:$0xff]
        %v296 = vld [vmem:[%s277 + $0x78] sm:$0xff]
        %v297 = vld [vmem:[%s277 + $0x80] sm:$0xff]
        %v298 = vld [vmem:[%s277 + $0x88] sm:$0xff]
        %v299 = vld [vmem:[%s277 + $0x90] sm:$0xff]
        %v300 = vld [vmem:[%s277 + $0x98] sm:$0xff]
        %v301 = vld [vmem:[%s277 + $0xa0] sm:$0xff]
        %v302 = vld [vmem:[%s277 + $0xa8] sm:$0xff]
        %v303 = vld [vmem:[%s277 + $0xb0] sm:$0xff]
        %v304 = vld [vmem:[%s277 + $0xb8] sm:$0xff]
        %v305 = vld [vmem:[%s277 + $0xc0] sm:$0xff]
        %v306 = vld [vmem:[%s277 + $0xc8] sm:$0xff]
        %v307 = vld [vmem:[%s277 + $0xd0] sm:$0xff]
        %v308 = vld [vmem:[%s277 + $0xd8] sm:$0xff]
        %v309 = vld [vmem:[%s277 + $0xe0] sm:$0xff]
        %v310 = vld [vmem:[%s277 + $0xe8] sm:$0xff]
        %v311 = vld [vmem:[%s277 + $0xf0] sm:$0xff]
        %v312 = vld [vmem:[%s277 + $0xf8] sm:$0xff]
        %v313 = vpack.c.bf16 %v282, %v281
        %v314 = vpack.c.bf16 %v284, %v283
        %v315 = vpack.c.bf16 %v286, %v285
        %v316 = vpack.c.bf16 %v288, %v287
        %v317 = vpack.c.bf16 %v290, %v289
        %v318 = vpack.c.bf16 %v292, %v291
        %v319 = vpack.c.bf16 %v294, %v293
        %v320 = vpack.c.bf16 %v296, %v295
        %v321 = vpack.c.bf16 %v298, %v297
        %v322 = vpack.c.bf16 %v300, %v299
        %v323 = vpack.c.bf16 %v302, %v301
        %v324 = vpack.c.bf16 %v304, %v303
        %v325 = vpack.c.bf16 %v306, %v305
        %v326 = vpack.c.bf16 %v308, %v307
        %v327 = vpack.c.bf16 %v310, %v309
        %v328 = vpack.c.bf16 %v312, %v311
        %v329 = vld [vmem:[%s1] sm:$0xf]
        %v330 = vld [vmem:[%s1 + $0x4] sm:$0xf]
        %v331 = vld [vmem:[%s2] sm:$0x1]
        %v333 = vperm.slane %v331, 0
        %v337 = vunpack.c.l.b16 %v329
        %v338 = vunpack.c.l.b16 %v330
        %v339 = vpack.c.b16 %v338, %v337
        %vm341 = vcmask 130048
        %v343 = vsel %vm341, %v313, 0
        %v346 = vsel %vm341, %v314, 0
        %v349 = vsel %vm341, %v315, 0
        %v352 = vsel %vm341, %v316, 0
        %v355 = vsel %vm341, %v317, 0
        %v358 = vsel %vm341, %v318, 0
        %v361 = vsel %vm341, %v319, 0
        %v364 = vsel %vm341, %v320, 0
        %v367 = vsel %vm341, %v321, 0
        %v370 = vsel %vm341, %v322, 0
        %v373 = vsel %vm341, %v323, 0
        %v376 = vsel %vm341, %v324, 0
        %v379 = vsel %vm341, %v325, 0
        %v382 = vsel %vm341, %v326, 0
        %v385 = vsel %vm341, %v327, 0
        %v388 = vsel %vm341, %v328, 0
        %390 = vmatpush.bf16.msra.mxu0 0
        %391 = vmatpush.bf16.msra.mxu0 0
        %392 = vmatpush.bf16.msra.mxu0 0
        %393 = vmatpush.bf16.msra.mxu0 0
        %394 = vmatpush.bf16.msra.mxu0 0
        %395 = vmatpush.bf16.msra.mxu0 0
        %396 = vmatpush.bf16.msra.mxu0 0
        %397 = vmatpush.bf16.msra.mxu0 %v339
        %398 = vmatmul.bf16.gmra.mxu0 %v343
        %v399 = vpop.f32.mrf.mxu0
        %v400 = vadd.f32 %v333, %v399
        %v401 = vpop.f32.mrf.mxu0
        %v402 = vadd.f32 %v333, %v401
        %403 = vmatmul.bf16.gmra.mxu0 %v346
        %v404 = vpop.f32.mrf.mxu0
        %v405 = vadd.f32 %v333, %v404
        %v406 = vpop.f32.mrf.mxu0
        %v407 = vadd.f32 %v333, %v406
        %408 = vmatmul.bf16.gmra.mxu0 %v349
        %v409 = vpop.f32.mrf.mxu0
        %v410 = vadd.f32 %v333, %v409
        %v411 = vpop.f32.mrf.mxu0
        %v412 = vadd.f32 %v333, %v411
        %413 = vmatmul.bf16.gmra.mxu0 %v352
        %v414 = vpop.f32.mrf.mxu0
        %v415 = vadd.f32 %v333, %v414
        %v416 = vpop.f32.mrf.mxu0
        %v417 = vadd.f32 %v333, %v416
        %418 = vmatmul.bf16.gmra.mxu0 %v355
        %v419 = vpop.f32.mrf.mxu0
        %v420 = vadd.f32 %v333, %v419
        %v421 = vpop.f32.mrf.mxu0
        %v422 = vadd.f32 %v333, %v421
        %423 = vmatmul.bf16.gmra.mxu0 %v358
        %v424 = vpop.f32.mrf.mxu0
        %v425 = vadd.f32 %v333, %v424
        %v426 = vpop.f32.mrf.mxu0
        %v427 = vadd.f32 %v333, %v426
        %428 = vmatmul.bf16.gmra.mxu0 %v361
        %v429 = vpop.f32.mrf.mxu0
        %v430 = vadd.f32 %v333, %v429
        %v431 = vpop.f32.mrf.mxu0
        %v432 = vadd.f32 %v333, %v431
        %433 = vmatmul.bf16.gmra.mxu0 %v364
        %v434 = vpop.f32.mrf.mxu0
        %v435 = vadd.f32 %v333, %v434
        %v436 = vpop.f32.mrf.mxu0
        %v437 = vadd.f32 %v333, %v436
        %438 = vmatmul.bf16.gmra.mxu0 %v367
        %v439 = vpop.f32.mrf.mxu0
        %v440 = vadd.f32 %v333, %v439
        %v441 = vpop.f32.mrf.mxu0
        %v442 = vadd.f32 %v333, %v441
        %443 = vmatmul.bf16.gmra.mxu0 %v370
        %v444 = vpop.f32.mrf.mxu0
        %v445 = vadd.f32 %v333, %v444
        %v446 = vpop.f32.mrf.mxu0
        %v447 = vadd.f32 %v333, %v446
        %448 = vmatmul.bf16.gmra.mxu0 %v373
        %v449 = vpop.f32.mrf.mxu0
        %v450 = vadd.f32 %v333, %v449
        %v451 = vpop.f32.mrf.mxu0
        %v452 = vadd.f32 %v333, %v451
        %453 = vmatmul.bf16.gmra.mxu0 %v376
        %v454 = vpop.f32.mrf.mxu0
        %v455 = vadd.f32 %v333, %v454
        %v456 = vpop.f32.mrf.mxu0
        %v457 = vadd.f32 %v333, %v456
        %458 = vmatmul.bf16.gmra.mxu0 %v379
        %v459 = vpop.f32.mrf.mxu0
        %v460 = vadd.f32 %v333, %v459
        %v461 = vpop.f32.mrf.mxu0
        %v462 = vadd.f32 %v333, %v461
        %463 = vmatmul.bf16.gmra.mxu0 %v382
        %v464 = vpop.f32.mrf.mxu0
        %v465 = vadd.f32 %v333, %v464
        %v466 = vpop.f32.mrf.mxu0
        %v467 = vadd.f32 %v333, %v466
        %468 = vmatmul.bf16.gmra.mxu0 %v385
        %v469 = vpop.f32.mrf.mxu0
        %v470 = vadd.f32 %v333, %v469
        %v471 = vpop.f32.mrf.mxu0
        %v472 = vadd.f32 %v333, %v471
        %473 = vmatmul.bf16.gmra.mxu0 %v388
        %v474 = vpop.f32.mrf.mxu0
        %v475 = vadd.f32 %v333, %v474
        %v476 = vpop.f32.mrf.mxu0
        %v477 = vadd.f32 %v333, %v476
        %478 = vdwg.mxu0
        %v479 = vmax.f32 %v400, 0.0
        %v480 = vmax.f32 %v402, 0.0
        %v481 = vmax.f32 %v405, 0.0
        %v482 = vmax.f32 %v407, 0.0
        %v483 = vmax.f32 %v410, 0.0
        %v484 = vmax.f32 %v412, 0.0
        %v485 = vmax.f32 %v415, 0.0
        %v486 = vmax.f32 %v417, 0.0
        %v487 = vmax.f32 %v420, 0.0
        %v488 = vmax.f32 %v422, 0.0
        %v489 = vmax.f32 %v425, 0.0
        %v490 = vmax.f32 %v427, 0.0
        %v491 = vmax.f32 %v430, 0.0
        %v492 = vmax.f32 %v432, 0.0
        %v493 = vmax.f32 %v435, 0.0
        %v494 = vmax.f32 %v437, 0.0
        %v495 = vmax.f32 %v440, 0.0
        %v496 = vmax.f32 %v442, 0.0
        %v497 = vmax.f32 %v445, 0.0
        %v498 = vmax.f32 %v447, 0.0
        %v499 = vmax.f32 %v450, 0.0
        %v500 = vmax.f32 %v452, 0.0
        %v501 = vmax.f32 %v455, 0.0
        %v502 = vmax.f32 %v457, 0.0
        %v503 = vmax.f32 %v460, 0.0
        %v504 = vmax.f32 %v462, 0.0
        %v505 = vmax.f32 %v465, 0.0
        %v506 = vmax.f32 %v467, 0.0
        %v507 = vmax.f32 %v470, 0.0
        %v508 = vmax.f32 %v472, 0.0
        %v509 = vmax.f32 %v475, 0.0
        %v510 = vmax.f32 %v477, 0.0
        %v511 = vpack.c.bf16 %v480, %v479
        %v512 = vpack.c.bf16 %v482, %v481
        %v513 = vpack.c.bf16 %v484, %v483
        %v514 = vpack.c.bf16 %v486, %v485
        %v515 = vpack.c.bf16 %v488, %v487
        %v516 = vpack.c.bf16 %v490, %v489
        %v517 = vpack.c.bf16 %v492, %v491
        %v518 = vpack.c.bf16 %v494, %v493
        %v519 = vpack.c.bf16 %v496, %v495
        %v520 = vpack.c.bf16 %v498, %v497
        %v521 = vpack.c.bf16 %v500, %v499
        %v522 = vpack.c.bf16 %v502, %v501
        %v523 = vpack.c.bf16 %v504, %v503
        %v524 = vpack.c.bf16 %v506, %v505
        %v525 = vpack.c.bf16 %v508, %v507
        %v526 = vpack.c.bf16 %v510, %v509
        %v527 = vld [vmem:[%s3] sm:$0xf]
        %v528 = vld [vmem:[%s3 + $0x4] sm:$0xf]
        %v529 = vld [vmem:[%s3 + $0x8] sm:$0xf]
        %v530 = vld [vmem:[%s3 + $0xc] sm:$0xf]
        %v531 = vld [vmem:[%s3 + $0x10] sm:$0xf]
        %v532 = vld [vmem:[%s3 + $0x14] sm:$0xf]
        %v533 = vld [vmem:[%s3 + $0x18] sm:$0xf]
        %v534 = vld [vmem:[%s3 + $0x1c] sm:$0xf]
        %v535 = vld [vmem:[%s3 + $0x20] sm:$0xf]
        %v536 = vld [vmem:[%s3 + $0x24] sm:$0xf]
        %v537 = vld [vmem:[%s3 + $0x28] sm:$0xf]
        %v538 = vld [vmem:[%s3 + $0x2c] sm:$0xf]
        %v539 = vld [vmem:[%s3 + $0x30] sm:$0xf]
        %v540 = vld [vmem:[%s3 + $0x34] sm:$0xf]
        %v541 = vld [vmem:[%s3 + $0x38] sm:$0xf]
        %v542 = vld [vmem:[%s3 + $0x3c] sm:$0xf]
        %v543 = vld [vmem:[%s4] sm:$0x1]
        %v545 = vperm.slane %v543, 0
        %v563 = vunpack.c.l.b16 %v527
        %v564 = vunpack.c.l.b16 %v528
        %v565 = vunpack.c.l.b16 %v529
        %v566 = vunpack.c.l.b16 %v530
        %v567 = vunpack.c.l.b16 %v531
        %v568 = vunpack.c.l.b16 %v532
        %v569 = vunpack.c.l.b16 %v533
        %v570 = vunpack.c.l.b16 %v534
        %v571 = vunpack.c.l.b16 %v535
        %v572 = vunpack.c.l.b16 %v536
        %v573 = vunpack.c.l.b16 %v537
        %v574 = vunpack.c.l.b16 %v538
        %v575 = vunpack.c.l.b16 %v539
        %v576 = vunpack.c.l.b16 %v540
        %v577 = vunpack.c.l.b16 %v541
        %v578 = vunpack.c.l.b16 %v542
        %v579 = vpack.c.b16 %v564, %v563
        %v580 = vpack.c.b16 %v566, %v565
        %v581 = vpack.c.b16 %v568, %v567
        %v582 = vpack.c.b16 %v570, %v569
        %v583 = vpack.c.b16 %v572, %v571
        %v584 = vpack.c.b16 %v574, %v573
        %v585 = vpack.c.b16 %v576, %v575
        %v586 = vpack.c.b16 %v578, %v577
        %595 = vmatpush.bf16.msra.mxu0 %v586
        %596 = vmatpush.bf16.msra.mxu0 %v585
        %597 = vmatpush.bf16.msra.mxu0 %v584
        %598 = vmatpush.bf16.msra.mxu0 %v583
        %599 = vmatpush.bf16.msra.mxu0 %v582
        %600 = vmatpush.bf16.msra.mxu0 %v581
        %601 = vmatpush.bf16.msra.mxu0 %v580
        %602 = vmatpush.bf16.msra.mxu0 %v579
        %603 = vmatmul.bf16.gmra.mxu0 %v511
        %v604 = vpop.f32.mrf.mxu0
        %v605 = vadd.f32 %v545, %v604
        %v606 = vpop.f32.mrf.mxu0
        %v607 = vadd.f32 %v545, %v606
        %608 = vmatmul.bf16.gmra.mxu0 %v512
        %v609 = vpop.f32.mrf.mxu0
        %v610 = vadd.f32 %v545, %v609
        %v611 = vpop.f32.mrf.mxu0
        %v612 = vadd.f32 %v545, %v611
        %613 = vmatmul.bf16.gmra.mxu0 %v513
        %v614 = vpop.f32.mrf.mxu0
        %v615 = vadd.f32 %v545, %v614
        %v616 = vpop.f32.mrf.mxu0
        %v617 = vadd.f32 %v545, %v616
        %618 = vmatmul.bf16.gmra.mxu0 %v514
        %v619 = vpop.f32.mrf.mxu0
        %v620 = vadd.f32 %v545, %v619
        %v621 = vpop.f32.mrf.mxu0
        %v622 = vadd.f32 %v545, %v621
        %623 = vmatmul.bf16.gmra.mxu0 %v515
        %v624 = vpop.f32.mrf.mxu0
        %v625 = vadd.f32 %v545, %v624
        %v626 = vpop.f32.mrf.mxu0
        %v627 = vadd.f32 %v545, %v626
        %628 = vmatmul.bf16.gmra.mxu0 %v516
        %v629 = vpop.f32.mrf.mxu0
        %v630 = vadd.f32 %v545, %v629
        %v631 = vpop.f32.mrf.mxu0
        %v632 = vadd.f32 %v545, %v631
        %633 = vmatmul.bf16.gmra.mxu0 %v517
        %v634 = vpop.f32.mrf.mxu0
        %v635 = vadd.f32 %v545, %v634
        %v636 = vpop.f32.mrf.mxu0
        %v637 = vadd.f32 %v545, %v636
        %638 = vmatmul.bf16.gmra.mxu0 %v518
        %v639 = vpop.f32.mrf.mxu0
        %v640 = vadd.f32 %v545, %v639
        %v641 = vpop.f32.mrf.mxu0
        %v642 = vadd.f32 %v545, %v641
        %643 = vmatmul.bf16.gmra.mxu0 %v519
        %v644 = vpop.f32.mrf.mxu0
        %v645 = vadd.f32 %v545, %v644
        %v646 = vpop.f32.mrf.mxu0
        %v647 = vadd.f32 %v545, %v646
        %648 = vmatmul.bf16.gmra.mxu0 %v520
        %v649 = vpop.f32.mrf.mxu0
        %v650 = vadd.f32 %v545, %v649
        %v651 = vpop.f32.mrf.mxu0
        %v652 = vadd.f32 %v545, %v651
        %653 = vmatmul.bf16.gmra.mxu0 %v521
        %v654 = vpop.f32.mrf.mxu0
        %v655 = vadd.f32 %v545, %v654
        %v656 = vpop.f32.mrf.mxu0
        %v657 = vadd.f32 %v545, %v656
        %658 = vmatmul.bf16.gmra.mxu0 %v522
        %v659 = vpop.f32.mrf.mxu0
        %v660 = vadd.f32 %v545, %v659
        %v661 = vpop.f32.mrf.mxu0
        %v662 = vadd.f32 %v545, %v661
        %663 = vmatmul.bf16.gmra.mxu0 %v523
        %v664 = vpop.f32.mrf.mxu0
        %v665 = vadd.f32 %v545, %v664
        %v666 = vpop.f32.mrf.mxu0
        %v667 = vadd.f32 %v545, %v666
        %668 = vmatmul.bf16.gmra.mxu0 %v524
        %v669 = vpop.f32.mrf.mxu0
        %v670 = vadd.f32 %v545, %v669
        %v671 = vpop.f32.mrf.mxu0
        %v672 = vadd.f32 %v545, %v671
        %673 = vmatmul.bf16.gmra.mxu0 %v525
        %v674 = vpop.f32.mrf.mxu0
        %v675 = vadd.f32 %v545, %v674
        %v676 = vpop.f32.mrf.mxu0
        %v677 = vadd.f32 %v545, %v676
        %678 = vmatmul.bf16.gmra.mxu0 %v526
        %v679 = vpop.f32.mrf.mxu0
        %v680 = vadd.f32 %v545, %v679
        %v681 = vpop.f32.mrf.mxu0
        %v682 = vadd.f32 %v545, %v681
        %683 = vdwg.mxu0
        %v684 = vmax.f32 %v605, 0.0
        %v685 = vmax.f32 %v607, 0.0
        %v686 = vmax.f32 %v610, 0.0
        %v687 = vmax.f32 %v612, 0.0
        %v688 = vmax.f32 %v615, 0.0
        %v689 = vmax.f32 %v617, 0.0
        %v690 = vmax.f32 %v620, 0.0
        %v691 = vmax.f32 %v622, 0.0
        %v692 = vmax.f32 %v625, 0.0
        %v693 = vmax.f32 %v627, 0.0
        %v694 = vmax.f32 %v630, 0.0
        %v695 = vmax.f32 %v632, 0.0
        %v696 = vmax.f32 %v635, 0.0
        %v697 = vmax.f32 %v637, 0.0
        %v698 = vmax.f32 %v640, 0.0
        %v699 = vmax.f32 %v642, 0.0
        %v700 = vmax.f32 %v645, 0.0
        %v701 = vmax.f32 %v647, 0.0
        %v702 = vmax.f32 %v650, 0.0
        %v703 = vmax.f32 %v652, 0.0
        %v704 = vmax.f32 %v655, 0.0
        %v705 = vmax.f32 %v657, 0.0
        %v706 = vmax.f32 %v660, 0.0
        %v707 = vmax.f32 %v662, 0.0
        %v708 = vmax.f32 %v665, 0.0
        %v709 = vmax.f32 %v667, 0.0
        %v710 = vmax.f32 %v670, 0.0
        %v711 = vmax.f32 %v672, 0.0
        %v712 = vmax.f32 %v675, 0.0
        %v713 = vmax.f32 %v677, 0.0
        %v714 = vmax.f32 %v680, 0.0
        %v715 = vmax.f32 %v682, 0.0
        %v716 = vpack.c.bf16 %v685, %v684
        %v717 = vpack.c.bf16 %v687, %v686
        %v718 = vpack.c.bf16 %v689, %v688
        %v719 = vpack.c.bf16 %v691, %v690
        %v720 = vpack.c.bf16 %v693, %v692
        %v721 = vpack.c.bf16 %v695, %v694
        %v722 = vpack.c.bf16 %v697, %v696
        %v723 = vpack.c.bf16 %v699, %v698
        %v724 = vpack.c.bf16 %v701, %v700
        %v725 = vpack.c.bf16 %v703, %v702
        %v726 = vpack.c.bf16 %v705, %v704
        %v727 = vpack.c.bf16 %v707, %v706
        %v728 = vpack.c.bf16 %v709, %v708
        %v729 = vpack.c.bf16 %v711, %v710
        %v730 = vpack.c.bf16 %v713, %v712
        %v731 = vpack.c.bf16 %v715, %v714
        %s732 = scalar_lea.vmem %s3, 64
        %v733 = vld [vmem:[%s732] sm:$0xf]
        %v734 = vld [vmem:[%s732 + $0x4] sm:$0xf]
        %v735 = vld [vmem:[%s732 + $0x8] sm:$0xf]
        %v736 = vld [vmem:[%s732 + $0xc] sm:$0xf]
        %v737 = vld [vmem:[%s732 + $0x10] sm:$0xf]
        %v738 = vld [vmem:[%s732 + $0x14] sm:$0xf]
        %v739 = vld [vmem:[%s732 + $0x18] sm:$0xf]
        %v740 = vld [vmem:[%s732 + $0x1c] sm:$0xf]
        %v741 = vld [vmem:[%s732 + $0x20] sm:$0xf]
        %v742 = vld [vmem:[%s732 + $0x24] sm:$0xf]
        %v743 = vld [vmem:[%s732 + $0x28] sm:$0xf]
        %v744 = vld [vmem:[%s732 + $0x2c] sm:$0xf]
        %v745 = vld [vmem:[%s732 + $0x30] sm:$0xf]
        %v746 = vld [vmem:[%s732 + $0x34] sm:$0xf]
        %v747 = vld [vmem:[%s732 + $0x38] sm:$0xf]
        %v748 = vld [vmem:[%s732 + $0x3c] sm:$0xf]
        %s749 = scalar_lea.vmem %s4, 1
        %v750 = vld [vmem:[%s749] sm:$0x1]
        %v752 = vperm.slane %v750, 0
        %v770 = vunpack.c.l.b16 %v733
        %v771 = vunpack.c.l.b16 %v734
        %v772 = vunpack.c.l.b16 %v735
        %v773 = vunpack.c.l.b16 %v736
        %v774 = vunpack.c.l.b16 %v737
        %v775 = vunpack.c.l.b16 %v738
        %v776 = vunpack.c.l.b16 %v739
        %v777 = vunpack.c.l.b16 %v740
        %v778 = vunpack.c.l.b16 %v741
        %v779 = vunpack.c.l.b16 %v742
        %v780 = vunpack.c.l.b16 %v743
        %v781 = vunpack.c.l.b16 %v744
        %v782 = vunpack.c.l.b16 %v745
        %v783 = vunpack.c.l.b16 %v746
        %v784 = vunpack.c.l.b16 %v747
        %v785 = vunpack.c.l.b16 %v748
        %v786 = vpack.c.b16 %v771, %v770
        %v787 = vpack.c.b16 %v773, %v772
        %v788 = vpack.c.b16 %v775, %v774
        %v789 = vpack.c.b16 %v777, %v776
        %v790 = vpack.c.b16 %v779, %v778
        %v791 = vpack.c.b16 %v781, %v780
        %v792 = vpack.c.b16 %v783, %v782
        %v793 = vpack.c.b16 %v785, %v784
        %802 = vmatpush.bf16.msra.mxu0 %v793
        %803 = vmatpush.bf16.msra.mxu0 %v792
        %804 = vmatpush.bf16.msra.mxu0 %v791
        %805 = vmatpush.bf16.msra.mxu0 %v790
        %806 = vmatpush.bf16.msra.mxu0 %v789
        %807 = vmatpush.bf16.msra.mxu0 %v788
        %808 = vmatpush.bf16.msra.mxu0 %v787
        %809 = vmatpush.bf16.msra.mxu0 %v786
        %810 = vmatmul.bf16.gmra.mxu0 %v716
        %v811 = vpop.f32.mrf.mxu0
        %v812 = vadd.f32 %v752, %v811
        %v813 = vpop.f32.mrf.mxu0
        %v814 = vadd.f32 %v752, %v813
        %815 = vmatmul.bf16.gmra.mxu0 %v717
        %v816 = vpop.f32.mrf.mxu0
        %v817 = vadd.f32 %v752, %v816
        %v818 = vpop.f32.mrf.mxu0
        %v819 = vadd.f32 %v752, %v818
        %820 = vmatmul.bf16.gmra.mxu0 %v718
        %v821 = vpop.f32.mrf.mxu0
        %v822 = vadd.f32 %v752, %v821
        %v823 = vpop.f32.mrf.mxu0
        %v824 = vadd.f32 %v752, %v823
        %825 = vmatmul.bf16.gmra.mxu0 %v719
        %v826 = vpop.f32.mrf.mxu0
        %v827 = vadd.f32 %v752, %v826
        %v828 = vpop.f32.mrf.mxu0
        %v829 = vadd.f32 %v752, %v828
        %830 = vmatmul.bf16.gmra.mxu0 %v720
        %v831 = vpop.f32.mrf.mxu0
        %v832 = vadd.f32 %v752, %v831
        %v833 = vpop.f32.mrf.mxu0
        %v834 = vadd.f32 %v752, %v833
        %835 = vmatmul.bf16.gmra.mxu0 %v721
        %v836 = vpop.f32.mrf.mxu0
        %v837 = vadd.f32 %v752, %v836
        %v838 = vpop.f32.mrf.mxu0
        %v839 = vadd.f32 %v752, %v838
        %840 = vmatmul.bf16.gmra.mxu0 %v722
        %v841 = vpop.f32.mrf.mxu0
        %v842 = vadd.f32 %v752, %v841
        %v843 = vpop.f32.mrf.mxu0
        %v844 = vadd.f32 %v752, %v843
        %845 = vmatmul.bf16.gmra.mxu0 %v723
        %v846 = vpop.f32.mrf.mxu0
        %v847 = vadd.f32 %v752, %v846
        %v848 = vpop.f32.mrf.mxu0
        %v849 = vadd.f32 %v752, %v848
        %850 = vmatmul.bf16.gmra.mxu0 %v724
        %v851 = vpop.f32.mrf.mxu0
        %v852 = vadd.f32 %v752, %v851
        %v853 = vpop.f32.mrf.mxu0
        %v854 = vadd.f32 %v752, %v853
        %855 = vmatmul.bf16.gmra.mxu0 %v725
        %v856 = vpop.f32.mrf.mxu0
        %v857 = vadd.f32 %v752, %v856
        %v858 = vpop.f32.mrf.mxu0
        %v859 = vadd.f32 %v752, %v858
        %860 = vmatmul.bf16.gmra.mxu0 %v726
        %v861 = vpop.f32.mrf.mxu0
        %v862 = vadd.f32 %v752, %v861
        %v863 = vpop.f32.mrf.mxu0
        %v864 = vadd.f32 %v752, %v863
        %865 = vmatmul.bf16.gmra.mxu0 %v727
        %v866 = vpop.f32.mrf.mxu0
        %v867 = vadd.f32 %v752, %v866
        %v868 = vpop.f32.mrf.mxu0
        %v869 = vadd.f32 %v752, %v868
        %870 = vmatmul.bf16.gmra.mxu0 %v728
        %v871 = vpop.f32.mrf.mxu0
        %v872 = vadd.f32 %v752, %v871
        %v873 = vpop.f32.mrf.mxu0
        %v874 = vadd.f32 %v752, %v873
        %875 = vmatmul.bf16.gmra.mxu0 %v729
        %v876 = vpop.f32.mrf.mxu0
        %v877 = vadd.f32 %v752, %v876
        %v878 = vpop.f32.mrf.mxu0
        %v879 = vadd.f32 %v752, %v878
        %880 = vmatmul.bf16.gmra.mxu0 %v730
        %v881 = vpop.f32.mrf.mxu0
        %v882 = vadd.f32 %v752, %v881
        %v883 = vpop.f32.mrf.mxu0
        %v884 = vadd.f32 %v752, %v883
        %885 = vmatmul.bf16.gmra.mxu0 %v731
        %v886 = vpop.f32.mrf.mxu0
        %v887 = vadd.f32 %v752, %v886
        %v888 = vpop.f32.mrf.mxu0
        %v889 = vadd.f32 %v752, %v888
        %890 = vdwg.mxu0
        %v891 = vmax.f32 %v812, 0.0
        %v892 = vmax.f32 %v814, 0.0
        %v893 = vmax.f32 %v817, 0.0
        %v894 = vmax.f32 %v819, 0.0
        %v895 = vmax.f32 %v822, 0.0
        %v896 = vmax.f32 %v824, 0.0
        %v897 = vmax.f32 %v827, 0.0
        %v898 = vmax.f32 %v829, 0.0
        %v899 = vmax.f32 %v832, 0.0
        %v900 = vmax.f32 %v834, 0.0
        %v901 = vmax.f32 %v837, 0.0
        %v902 = vmax.f32 %v839, 0.0
        %v903 = vmax.f32 %v842, 0.0
        %v904 = vmax.f32 %v844, 0.0
        %v905 = vmax.f32 %v847, 0.0
        %v906 = vmax.f32 %v849, 0.0
        %v907 = vmax.f32 %v852, 0.0
        %v908 = vmax.f32 %v854, 0.0
        %v909 = vmax.f32 %v857, 0.0
        %v910 = vmax.f32 %v859, 0.0
        %v911 = vmax.f32 %v862, 0.0
        %v912 = vmax.f32 %v864, 0.0
        %v913 = vmax.f32 %v867, 0.0
        %v914 = vmax.f32 %v869, 0.0
        %v915 = vmax.f32 %v872, 0.0
        %v916 = vmax.f32 %v874, 0.0
        %v917 = vmax.f32 %v877, 0.0
        %v918 = vmax.f32 %v879, 0.0
        %v919 = vmax.f32 %v882, 0.0
        %v920 = vmax.f32 %v884, 0.0
        %v921 = vmax.f32 %v887, 0.0
        %v922 = vmax.f32 %v889, 0.0
        %v923 = vpack.c.bf16 %v892, %v891
        %v924 = vpack.c.bf16 %v894, %v893
        %v925 = vpack.c.bf16 %v896, %v895
        %v926 = vpack.c.bf16 %v898, %v897
        %v927 = vpack.c.bf16 %v900, %v899
        %v928 = vpack.c.bf16 %v902, %v901
        %v929 = vpack.c.bf16 %v904, %v903
        %v930 = vpack.c.bf16 %v906, %v905
        %v931 = vpack.c.bf16 %v908, %v907
        %v932 = vpack.c.bf16 %v910, %v909
        %v933 = vpack.c.bf16 %v912, %v911
        %v934 = vpack.c.bf16 %v914, %v913
        %v935 = vpack.c.bf16 %v916, %v915
        %v936 = vpack.c.bf16 %v918, %v917
        %v937 = vpack.c.bf16 %v920, %v919
        %v938 = vpack.c.bf16 %v922, %v921
        %v939 = vld [vmem:[%s5] sm:$0xf]
        %v940 = vld [vmem:[%s5 + $0x4] sm:$0xf]
        %v941 = vld [vmem:[%s5 + $0x8] sm:$0xf]
        %v942 = vld [vmem:[%s5 + $0xc] sm:$0xf]
        %v943 = vld [vmem:[%s5 + $0x10] sm:$0xf]
        %v944 = vld [vmem:[%s5 + $0x14] sm:$0xf]
        %v945 = vld [vmem:[%s5 + $0x18] sm:$0xf]
        %v946 = vld [vmem:[%s5 + $0x1c] sm:$0xf]
        %v947 = vld [vmem:[%s5 + $0x20] sm:$0xf]
        %v948 = vld [vmem:[%s5 + $0x24] sm:$0xf]
        %v949 = vld [vmem:[%s5 + $0x28] sm:$0xf]
        %v950 = vld [vmem:[%s5 + $0x2c] sm:$0xf]
        %v951 = vld [vmem:[%s5 + $0x30] sm:$0xf]
        %v952 = vld [vmem:[%s5 + $0x34] sm:$0xf]
        %v953 = vld [vmem:[%s5 + $0x38] sm:$0xf]
        %v954 = vld [vmem:[%s5 + $0x3c] sm:$0xf]
        %v955 = vld [vmem:[%s6] sm:$0x1]
        %v957 = vperm.slane %v955, 0
        %v975 = vunpack.c.l.b16 %v939
        %v976 = vunpack.c.l.b16 %v940
        %v977 = vunpack.c.l.b16 %v941
        %v978 = vunpack.c.l.b16 %v942
        %v979 = vunpack.c.l.b16 %v943
        %v980 = vunpack.c.l.b16 %v944
        %v981 = vunpack.c.l.b16 %v945
        %v982 = vunpack.c.l.b16 %v946
        %v983 = vunpack.c.l.b16 %v947
        %v984 = vunpack.c.l.b16 %v948
        %v985 = vunpack.c.l.b16 %v949
        %v986 = vunpack.c.l.b16 %v950
        %v987 = vunpack.c.l.b16 %v951
        %v988 = vunpack.c.l.b16 %v952
        %v989 = vunpack.c.l.b16 %v953
        %v990 = vunpack.c.l.b16 %v954
        %v991 = vpack.c.b16 %v976, %v975
        %v992 = vpack.c.b16 %v978, %v977
        %v993 = vpack.c.b16 %v980, %v979
        %v994 = vpack.c.b16 %v982, %v981
        %v995 = vpack.c.b16 %v984, %v983
        %v996 = vpack.c.b16 %v986, %v985
        %v997 = vpack.c.b16 %v988, %v987
        %v998 = vpack.c.b16 %v990, %v989
        %1007 = vmatpush.bf16.msra.mxu0 %v998
        %1008 = vmatpush.bf16.msra.mxu0 %v997
        %1009 = vmatpush.bf16.msra.mxu0 %v996
        %1010 = vmatpush.bf16.msra.mxu0 %v995
        %1011 = vmatpush.bf16.msra.mxu0 %v994
        %1012 = vmatpush.bf16.msra.mxu0 %v993
        %1013 = vmatpush.bf16.msra.mxu0 %v992
        %1014 = vmatpush.bf16.msra.mxu0 %v991
        %1015 = vmatmul.bf16.gmra.mxu0 %v923
        %v1016 = vpop.f32.mrf.mxu0
        %v1017 = vadd.f32 %v957, %v1016
        %v1018 = vpop.f32.mrf.mxu0
        %v1019 = vadd.f32 %v957, %v1018
        %1020 = vmatmul.bf16.gmra.mxu0 %v924
        %v1021 = vpop.f32.mrf.mxu0
        %v1022 = vadd.f32 %v957, %v1021
        %v1023 = vpop.f32.mrf.mxu0
        %v1024 = vadd.f32 %v957, %v1023
        %1025 = vmatmul.bf16.gmra.mxu0 %v925
        %v1026 = vpop.f32.mrf.mxu0
        %v1027 = vadd.f32 %v957, %v1026
        %v1028 = vpop.f32.mrf.mxu0
        %v1029 = vadd.f32 %v957, %v1028
        %1030 = vmatmul.bf16.gmra.mxu0 %v926
        %v1031 = vpop.f32.mrf.mxu0
        %v1032 = vadd.f32 %v957, %v1031
        %v1033 = vpop.f32.mrf.mxu0
        %v1034 = vadd.f32 %v957, %v1033
        %1035 = vmatmul.bf16.gmra.mxu0 %v927
        %v1036 = vpop.f32.mrf.mxu0
        %v1037 = vadd.f32 %v957, %v1036
        %v1038 = vpop.f32.mrf.mxu0
        %v1039 = vadd.f32 %v957, %v1038
        %1040 = vmatmul.bf16.gmra.mxu0 %v928
        %v1041 = vpop.f32.mrf.mxu0
        %v1042 = vadd.f32 %v957, %v1041
        %v1043 = vpop.f32.mrf.mxu0
        %v1044 = vadd.f32 %v957, %v1043
        %1045 = vmatmul.bf16.gmra.mxu0 %v929
        %v1046 = vpop.f32.mrf.mxu0
        %v1047 = vadd.f32 %v957, %v1046
        %v1048 = vpop.f32.mrf.mxu0
        %v1049 = vadd.f32 %v957, %v1048
        %1050 = vmatmul.bf16.gmra.mxu0 %v930
        %v1051 = vpop.f32.mrf.mxu0
        %v1052 = vadd.f32 %v957, %v1051
        %v1053 = vpop.f32.mrf.mxu0
        %v1054 = vadd.f32 %v957, %v1053
        %1055 = vmatmul.bf16.gmra.mxu0 %v931
        %v1056 = vpop.f32.mrf.mxu0
        %v1057 = vadd.f32 %v957, %v1056
        %v1058 = vpop.f32.mrf.mxu0
        %v1059 = vadd.f32 %v957, %v1058
        %1060 = vmatmul.bf16.gmra.mxu0 %v932
        %v1061 = vpop.f32.mrf.mxu0
        %v1062 = vadd.f32 %v957, %v1061
        %v1063 = vpop.f32.mrf.mxu0
        %v1064 = vadd.f32 %v957, %v1063
        %1065 = vmatmul.bf16.gmra.mxu0 %v933
        %v1066 = vpop.f32.mrf.mxu0
        %v1067 = vadd.f32 %v957, %v1066
        %v1068 = vpop.f32.mrf.mxu0
        %v1069 = vadd.f32 %v957, %v1068
        %1070 = vmatmul.bf16.gmra.mxu0 %v934
        %v1071 = vpop.f32.mrf.mxu0
        %v1072 = vadd.f32 %v957, %v1071
        %v1073 = vpop.f32.mrf.mxu0
        %v1074 = vadd.f32 %v957, %v1073
        %1075 = vmatmul.bf16.gmra.mxu0 %v935
        %v1076 = vpop.f32.mrf.mxu0
        %v1077 = vadd.f32 %v957, %v1076
        %v1078 = vpop.f32.mrf.mxu0
        %v1079 = vadd.f32 %v957, %v1078
        %1080 = vmatmul.bf16.gmra.mxu0 %v936
        %v1081 = vpop.f32.mrf.mxu0
        %v1082 = vadd.f32 %v957, %v1081
        %v1083 = vpop.f32.mrf.mxu0
        %v1084 = vadd.f32 %v957, %v1083
        %1085 = vmatmul.bf16.gmra.mxu0 %v937
        %v1086 = vpop.f32.mrf.mxu0
        %v1087 = vadd.f32 %v957, %v1086
        %v1088 = vpop.f32.mrf.mxu0
        %v1089 = vadd.f32 %v957, %v1088
        %1090 = vmatmul.bf16.gmra.mxu0 %v938
        %v1091 = vpop.f32.mrf.mxu0
        %v1092 = vadd.f32 %v957, %v1091
        %v1093 = vpop.f32.mrf.mxu0
        %v1094 = vadd.f32 %v957, %v1093
        %1095 = vdwg.mxu0
        %1096 = vst [vmem:[%s272] sm:$0xff] %v1017
        %1097 = vst [vmem:[%s272 + $0x8] sm:$0xff] %v1019
        %1098 = vst [vmem:[%s272 + $0x10] sm:$0xff] %v1022
        %1099 = vst [vmem:[%s272 + $0x18] sm:$0xff] %v1024
        %1100 = vst [vmem:[%s272 + $0x20] sm:$0xff] %v1027
        %1101 = vst [vmem:[%s272 + $0x28] sm:$0xff] %v1029
        %1102 = vst [vmem:[%s272 + $0x30] sm:$0xff] %v1032
        %1103 = vst [vmem:[%s272 + $0x38] sm:$0xff] %v1034
        %1104 = vst [vmem:[%s272 + $0x40] sm:$0xff] %v1037
        %1105 = vst [vmem:[%s272 + $0x48] sm:$0xff] %v1039
        %1106 = vst [vmem:[%s272 + $0x50] sm:$0xff] %v1042
        %1107 = vst [vmem:[%s272 + $0x58] sm:$0xff] %v1044
        %1108 = vst [vmem:[%s272 + $0x60] sm:$0xff] %v1047
        %1109 = vst [vmem:[%s272 + $0x68] sm:$0xff] %v1049
        %1110 = vst [vmem:[%s272 + $0x70] sm:$0xff] %v1052
        %1111 = vst [vmem:[%s272 + $0x78] sm:$0xff] %v1054
        %1112 = vst [vmem:[%s272 + $0x80] sm:$0xff] %v1057
        %1113 = vst [vmem:[%s272 + $0x88] sm:$0xff] %v1059
        %1114 = vst [vmem:[%s272 + $0x90] sm:$0xff] %v1062
        %1115 = vst [vmem:[%s272 + $0x98] sm:$0xff] %v1064
        %1116 = vst [vmem:[%s272 + $0xa0] sm:$0xff] %v1067
        %1117 = vst [vmem:[%s272 + $0xa8] sm:$0xff] %v1069
        %1118 = vst [vmem:[%s272 + $0xb0] sm:$0xff] %v1072
        %1119 = vst [vmem:[%s272 + $0xb8] sm:$0xff] %v1074
        %1120 = vst [vmem:[%s272 + $0xc0] sm:$0xff] %v1077
        %1121 = vst [vmem:[%s272 + $0xc8] sm:$0xff] %v1079
        %1122 = vst [vmem:[%s272 + $0xd0] sm:$0xff] %v1082
        %1123 = vst [vmem:[%s272 + $0xd8] sm:$0xff] %v1084
        %1124 = vst [vmem:[%s272 + $0xe0] sm:$0xff] %v1087
        %1125 = vst [vmem:[%s272 + $0xe8] sm:$0xff] %v1089
        %1126 = vst [vmem:[%s272 + $0xf0] sm:$0xff] %v1092
        %1127 = vst [vmem:[%s272 + $0xf8] sm:$0xff] %v1094
        %s1128 = sand.u32 %s181, 1
        %s1129 = scalar_lea.sflag [#allocation3], %s1128
        %s1130 = sand.u32 %s181, 1
        %s1131 = smul.addr %s1130, 256
        %s1132 = scalar_lea.vmem [#allocation2], %s1131
        // Predicated region
        $region49: #{tpu_custom_call.1} parent=47 // pred_check
          %p1133 = pneg %p191
        $region50: #{tpu_custom_call.1} parent=47 // pred_check_branch
          %1135 = sbr.rel (%p1133) target = $region52
        $region51: #{tpu_custom_call.1} parent=47 // pred_region
          %s1136 = smul.u32 32, %s21
          %1138 = vsyncadd %s1129, 0
          %s1139 = smul.addr %s1136, 8
          %s1140 = scalar_lea.hbm %s7, %s1139
          %s1141 = sshll.u32 %s1132, 4
          %s1142 = int_to_ptr.vmem [resolvable:$true] %s1141
          %s1143 = sshll.u32 %s1140, 4
          %s1144 = int_to_ptr.hbm [resolvable:$true] %s1143
          %1149 = dma.vmem_to_hbm [thread:$0]  %s1142, 4096, %s1144, %s1129, 128, 128, 8
        $region52: #{tpu_custom_call.1} parent=47 // pred_fallthru
          _
      $region48: #{tpu_custom_call.1} parent=5 // pred_fallthru
        _
      %p1150 = scmp.le.s32.totalorder 2, %s16
      // Predicated region
      $region53: #{tpu_custom_call.1} parent=5 // pred_check
        %p1151 = pneg %p1150
      $region54: #{tpu_custom_call.1} parent=5 // pred_check_branch
        %1153 = sbr.rel (%p1151) target = $region56
      $region55: #{tpu_custom_call.1} parent=5 // pred_region
        %s1154 = ssub.s32 %s16, 2
        // Predicated region
        $region57: #{tpu_custom_call.1} parent=55 // pred_check
          %p1155 = pneg %p197
        $region58: #{tpu_custom_call.1} parent=55 // pred_check_branch
          %1157 = sbr.rel (%p1155) target = $region60
        $region59: #{tpu_custom_call.1} parent=55 // pred_region
          %s1158 = sand.u32 %s182, 1
          %s1159 = scalar_lea.sflag [#allocation3], %s1158
          %s1160 = sand.u32 %s182, 1
          %s1161 = smul.addr %s1160, 256
          %s1162 = scalar_lea.vmem [#allocation2], %s1161
          %1164 = dma.done %s1159, 4096
        $region60: #{tpu_custom_call.1} parent=55 // pred_fallthru
          _
      $region56: #{tpu_custom_call.1} parent=5 // pred_fallthru
        _
    $region6: #{tpu_custom_call.1} parent=1 // loop_footer
      %s20 = sadd.s32 1, %s16
    $region7: #{tpu_custom_call.1} parent=1 // loop_footer_branch
      %15 = sbr.rel target = $region3
    $region8: #{tpu_custom_call.1} parent=1 // loop_exit
      _
    %1165 = vsyncpa [#allocation3], 1
    %s1166 = scalar_lea.sflag [#allocation3], 1
    %1167 = vsyncpa %s1166, 1

// kernel: tpu_custom_call.1
$region0: #{tpu_custom_call.1}
  #allocation0 [shape = 'u32[]', space=smem, size = 0x4, offset = 0x4, fixed_abs, tag = 'smem constant byte address 0x4 - core index']
  #allocation1 [shape = 'u32[72,128]{1,0:T(1,128)}', space=vmem, size = 0x9000, scoped, tag = 'internal scratch']
  %s0 = inlined_call_operand.vmem [shape: f32[512,16], index: 0, kind: input, shape index: {}]
  %s1 = inlined_call_operand.vmem [shape: bf16[16,128], index: 1, kind: input, shape index: {}]
  %s2 = inlined_call_operand.vmem [shape: f32[1,128], index: 2, kind: input, shape index: {}]
  %s3 = inlined_call_operand.vmem [shape: bf16[2,128,128], index: 3, kind: input, shape index: {}]
  %s4 = inlined_call_operand.vmem [shape: f32[2,1,128], index: 4, kind: input, shape index: {}]
  %s5 = inlined_call_operand.vmem [shape: bf16[128,128], index: 5, kind: input, shape index: {}]
  %s6 = inlined_call_operand.vmem [shape: f32[1,128], index: 6, kind: input, shape index: {}]
  %s7 = inlined_call_operand.hbm [shape: f32[512,128], index: 7, kind: output, shape index: {}]
  %s8 = sld [smem:[#allocation0]]
  $region61: #{tpu_custom_call.1} parent=0
    _
  %s10 = ssub.s32 1, %s8
  %s11 = scalar_select 0, %s10, %s8
  $region1: #{tpu_custom_call.1} parent=0
    #allocation2 [shape = 'u8[262144]{0}', space=vmem, size = 0x40000, scoped, tag = 'output window, operand 0']
    #allocation3 [shape = 's32[2]{0}', space=sflag, size = 0x8, scoped, tag = 'scoped memory for tpu_custom_call.1']
    %12 = vsyncpa [#allocation3], 0
    %s13 = scalar_lea.sflag [#allocation3], 1
    %14 = vsyncpa %s13, 0
    loop: start=0, step=1, limit=4
    $region2: #{tpu_custom_call.1} parent=1 // loop_pre_header
      _
    $region3: #{tpu_custom_call.1} parent=1 // loop_header
      %s16 = sphi 0, %s20
      %p17 = scmp.ge.s32.totalorder %s16, 4
      %s26 = sphi 0, %s28
      %s29 = sphi 0, %s26
      %s30 = sphi 0, %s29
      %s46 = sphi 0, %s30
      %s50 = sphi 0, %s50
      %s52 = sphi 0, %s50
      %s53 = sphi 0, %s52
      %s67 = sphi 0, %s53
      %s71 = sphi 0, %s71
      %s73 = sphi 0, %s71
      %s74 = sphi 0, %s73
      %s88 = sphi 0, %s74
      %s92 = sphi 0, %s92
      %s94 = sphi 0, %s92
      %s95 = sphi 0, %s94
      %s109 = sphi 0, %s95
      %s113 = sphi 0, %s113
      %s115 = sphi 0, %s113
      %s116 = sphi 0, %s115
      %s130 = sphi 0, %s116
      %s134 = sphi 0, %s134
      %s136 = sphi 0, %s134
      %s137 = sphi 0, %s136
      %s151 = sphi 0, %s137
      %s155 = sphi 0, %s155
      %s157 = sphi 0, %s155
      %s158 = sphi 0, %s157
      %s172 = sphi 0, %s158
      %s178 = sphi 0, %s180
      %s181 = sphi 0, %s178
      %s182 = sphi 0, %s181
      %s198 = sphi 0, %s182
    $region4: #{tpu_custom_call.1} parent=1 // loop_header_branch
      %19 = sbr.rel (%p17) target = $region8
    $region5: #{tpu_custom_call.1} parent=1 // loop_body
      %s21 = ssub.s32 %s16, 1
      %s22 = ssub.s32 %s16, 2
      %s23 = sadd.s32 %s16, 1
      %s24 = ssub.s32 %s16, %s23
      %p25 = scmp.eq.s32.totalorder %s24, 0
      %s27 = sadd.s32 %s26, 1
      %s28 = scalar_select %p25, %s26, %s27
      %p31 = pneg %p25
      %p32 = scmp.eq.s32.totalorder %s16, 1
      %p33 = por %p31, %p32
      %p34 = scmp.ne.s32.totalorder %s26, %s29
      %p35 = scmp.eq.s32.totalorder %s16, 0
      %p36 = por %p34, %p35
      %p37 = scmp.ne.s32.totalorder %s26, %s29
      %p38 = scmp.eq.s32.totalorder %s21, 1
      %p39 = por %p37, %p38
      %p40 = scmp.ne.s32.totalorder %s29, %s30
      %p41 = scmp.eq.s32.totalorder %s21, 0
      %p42 = por %p40, %p41
      %p43 = scmp.ne.s32.totalorder %s29, %s30
      %p44 = scmp.eq.s32.totalorder %s22, 1
      %p45 = por %p43, %p44
      %p47 = scmp.ne.s32.totalorder %s30, %s46
      %p48 = scmp.eq.s32.totalorder %s22, 0
      %p49 = por %p47, %p48
      %s51 = sadd.s32 %s50, 1
      %p54 = scmp.eq.s32.totalorder %s16, 1
      %p55 = scmp.ne.s32.totalorder %s50, %s52
      %p56 = scmp.eq.s32.totalorder %s16, 0
      %p57 = por %p55, %p56
      %p58 = scmp.ne.s32.totalorder %s50, %s52
      %p59 = scmp.eq.s32.totalorder %s21, 1
      %p60 = por %p58, %p59
      %p61 = scmp.ne.s32.totalorder %s52, %s53
      %p62 = scmp.eq.s32.totalorder %s21, 0
      %p63 = por %p61, %p62
      %p64 = scmp.ne.s32.totalorder %s52, %s53
      %p65 = scmp.eq.s32.totalorder %s22, 1
      %p66 = por %p64, %p65
      %p68 = scmp.ne.s32.totalorder %s53, %s67
      %p69 = scmp.eq.s32.totalorder %s22, 0
      %p70 = por %p68, %p69
      %s72 = sadd.s32 %s71, 1
      %p75 = scmp.eq.s32.totalorder %s16, 1
      %p76 = scmp.ne.s32.totalorder %s71, %s73
      %p77 = scmp.eq.s32.totalorder %s16, 0
      %p78 = por %p76, %p77
      %p79 = scmp.ne.s32.totalorder %s71, %s73
      %p80 = scmp.eq.s32.totalorder %s21, 1
      %p81 = por %p79, %p80
      %p82 = scmp.ne.s32.totalorder %s73, %s74
      %p83 = scmp.eq.s32.totalorder %s21, 0
      %p84 = por %p82, %p83
      %p85 = scmp.ne.s32.totalorder %s73, %s74
      %p86 = scmp.eq.s32.totalorder %s22, 1
      %p87 = por %p85, %p86
      %p89 = scmp.ne.s32.totalorder %s74, %s88
      %p90 = scmp.eq.s32.totalorder %s22, 0
      %p91 = por %p89, %p90
      %s93 = sadd.s32 %s92, 1
      %p96 = scmp.eq.s32.totalorder %s16, 1
      %p97 = scmp.ne.s32.totalorder %s92, %s94
      %p98 = scmp.eq.s32.totalorder %s16, 0
      %p99 = por %p97, %p98
      %p100 = scmp.ne.s32.totalorder %s92, %s94
      %p101 = scmp.eq.s32.totalorder %s21, 1
      %p102 = por %p100, %p101
      %p103 = scmp.ne.s32.totalorder %s94, %s95
      %p104 = scmp.eq.s32.totalorder %s21, 0
      %p105 = por %p103, %p104
      %p106 = scmp.ne.s32.totalorder %s94, %s95
      %p107 = scmp.eq.s32.totalorder %s22, 1
      %p108 = por %p106, %p107
      %p110 = scmp.ne.s32.totalorder %s95, %s109
      %p111 = scmp.eq.s32.totalorder %s22, 0
      %p112 = por %p110, %p111
      %s114 = sadd.s32 %s113, 1
      %p117 = scmp.eq.s32.totalorder %s16, 1
      %p118 = scmp.ne.s32.totalorder %s113, %s115
      %p119 = scmp.eq.s32.totalorder %s16, 0
      %p120 = por %p118, %p119
      %p121 = scmp.ne.s32.totalorder %s113, %s115
      %p122 = scmp.eq.s32.totalorder %s21, 1
      %p123 = por %p121, %p122
      %p124 = scmp.ne.s32.totalorder %s115, %s116
      %p125 = scmp.eq.s32.totalorder %s21, 0
      %p126 = por %p124, %p125
      %p127 = scmp.ne.s32.totalorder %s115, %s116
      %p128 = scmp.eq.s32.totalorder %s22, 1
      %p129 = por %p127, %p128
      %p131 = scmp.ne.s32.totalorder %s116, %s130
      %p132 = scmp.eq.s32.totalorder %s22, 0
      %p133 = por %p131, %p132
      %s135 = sadd.s32 %s134, 1
      %p138 = scmp.eq.s32.totalorder %s16, 1
      %p139 = scmp.ne.s32.totalorder %s134, %s136
      %p140 = scmp.eq.s32.totalorder %s16, 0
      %p141 = por %p139, %p140
      %p142 = scmp.ne.s32.totalorder %s134, %s136
      %p143 = scmp.eq.s32.totalorder %s21, 1
      %p144 = por %p142, %p143
      %p145 = scmp.ne.s32.totalorder %s136, %s137
      %p146 = scmp.eq.s32.totalorder %s21, 0
      %p147 = por %p145, %p146
      %p148 = scmp.ne.s32.totalorder %s136, %s137
      %p149 = scmp.eq.s32.totalorder %s22, 1
      %p150 = por %p148, %p149
      %p152 = scmp.ne.s32.totalorder %s137, %s151
      %p153 = scmp.eq.s32.totalorder %s22, 0
      %p154 = por %p152, %p153
      %s156 = sadd.s32 %s155, 1
      %p159 = scmp.eq.s32.totalorder %s16, 1
      %p160 = scmp.ne.s32.totalorder %s155, %s157
      %p161 = scmp.eq.s32.totalorder %s16, 0
      %p162 = por %p160, %p161
      %p163 = scmp.ne.s32.totalorder %s155, %s157
      %p164 = scmp.eq.s32.totalorder %s21, 1
      %p165 = por %p163, %p164
      %p166 = scmp.ne.s32.totalorder %s157, %s158
      %p167 = scmp.eq.s32.totalorder %s21, 0
      %p168 = por %p166, %p167
      %p169 = scmp.ne.s32.totalorder %s157, %s158
      %p170 = scmp.eq.s32.totalorder %s22, 1
      %p171 = por %p169, %p170
      %p173 = scmp.ne.s32.totalorder %s158, %s172
      %p174 = scmp.eq.s32.totalorder %s22, 0
      %p175 = por %p173, %p174
      %s176 = ssub.s32 %s16, %s23
      %p177 = scmp.eq.s32.totalorder %s176, 0
      %s179 = sadd.s32 %s178, 1
      %s180 = scalar_select %p177, %s178, %s179
      %p183 = pneg %p177
      %p184 = scmp.eq.s32.totalorder %s16, 1
      %p185 = por %p183, %p184
      %p186 = scmp.ne.s32.totalorder %s178, %s181
      %p187 = scmp.eq.s32.totalorder %s16, 0
      %p188 = por %p186, %p187
      %p189 = scmp.ne.s32.totalorder %s178, %s181
      %p190 = scmp.eq.s32.totalorder %s21, 1
      %p191 = por %p189, %p190
      %p192 = scmp.ne.s32.totalorder %s181, %s182
      %p193 = scmp.eq.s32.totalorder %s21, 0
      %p194 = por %p192, %p193
      %p195 = scmp.ne.s32.totalorder %s181, %s182
      %p196 = scmp.eq.s32.totalorder %s22, 1
      %p197 = por %p195, %p196
      %p199 = scmp.ne.s32.totalorder %s182, %s198
      %p200 = scmp.eq.s32.totalorder %s22, 0
      %p201 = por %p199, %p200
      %p202 = scmp.le.s32.totalorder 1, %s16
      %p203 = scmp.lt.s32.totalorder %s16, 3
      %p204 = pnand %p202, %p203
      %p205 = pneg %p204
      // Predicated region
      $region9: #{tpu_custom_call.1} parent=5 // pred_check
        _
      $region10: #{tpu_custom_call.1} parent=5 // pred_check_branch
        %207 = sbr.rel (%p204) target = $region12
      $region11: #{tpu_custom_call.1} parent=5 // pred_region
        %s208 = ssub.s32 %s16, 1
        // Predicated region
        $region13: #{tpu_custom_call.1} parent=11 // pred_check
          %p209 = pneg %p63
        $region14: #{tpu_custom_call.1} parent=11 // pred_check_branch
          %211 = sbr.rel (%p209) target = $region16
        $region15: #{tpu_custom_call.1} parent=11 // pred_region
          _
        $region16: #{tpu_custom_call.1} parent=11 // pred_fallthru
          _
        // Predicated region
        $region17: #{tpu_custom_call.1} parent=11 // pred_check
          %p212 = pneg %p84
        $region18: #{tpu_custom_call.1} parent=11 // pred_check_branch
          %214 = sbr.rel (%p212) target = $region20
        $region19: #{tpu_custom_call.1} parent=11 // pred_region
          _
        $region20: #{tpu_custom_call.1} parent=11 // pred_fallthru
          _
        // Predicated region
        $region21: #{tpu_custom_call.1} parent=11 // pred_check
          %p215 = pneg %p105
        $region22: #{tpu_custom_call.1} parent=11 // pred_check_branch
          %217 = sbr.rel (%p215) target = $region24
        $region23: #{tpu_custom_call.1} parent=11 // pred_region
          _
        $region24: #{tpu_custom_call.1} parent=11 // pred_fallthru
          _
        // Predicated region
        $region25: #{tpu_custom_call.1} parent=11 // pred_check
          %p218 = pneg %p126
        $region26: #{tpu_custom_call.1} parent=11 // pred_check_branch
          %220 = sbr.rel (%p218) target = $region28
        $region27: #{tpu_custom_call.1} parent=11 // pred_region
          _
        $region28: #{tpu_custom_call.1} parent=11 // pred_fallthru
          _
        // Predicated region
        $region29: #{tpu_custom_call.1} parent=11 // pred_check
          %p221 = pneg %p147
        $region30: #{tpu_custom_call.1} parent=11 // pred_check_branch
          %223 = sbr.rel (%p221) target = $region32
        $region31: #{tpu_custom_call.1} parent=11 // pred_region
          _
        $region32: #{tpu_custom_call.1} parent=11 // pred_fallthru
          _
        // Predicated region
        $region33: #{tpu_custom_call.1} parent=11 // pred_check
          %p224 = pneg %p168
        $region34: #{tpu_custom_call.1} parent=11 // pred_check_branch
          %226 = sbr.rel (%p224) target = $region36
        $region35: #{tpu_custom_call.1} parent=11 // pred_region
          _
        $region36: #{tpu_custom_call.1} parent=11 // pred_fallthru
          _
      $region12: #{tpu_custom_call.1} parent=5 // pred_fallthru
        _
      %p227 = scmp.lt.s32.totalorder %s16, 2
      // Predicated region
      $region37: #{tpu_custom_call.1} parent=5 // pred_check
        %p228 = pneg %p227
      $region38: #{tpu_custom_call.1} parent=5 // pred_check_branch
        %230 = sbr.rel (%p228) target = $region40
      $region39: #{tpu_custom_call.1} parent=5 // pred_region
        // Predicated region
        $region41: #{tpu_custom_call.1} parent=39 // pred_check
          %p231 = pneg %p36
        $region42: #{tpu_custom_call.1} parent=39 // pred_check_branch
          %233 = sbr.rel (%p231) target = $region44
        $region43: #{tpu_custom_call.1} parent=39 // pred_region
          %s234 = smul.u32 32, %s16
          %p235 = scmp.lt.s32.totalorder %s234, 63
          %s236 = scalar_select %p235, %s234, 63
          %s237 = smul.addr %s236, 8
          %s238 = scalar_lea.vmem %s0, %s237
          %s239 = smul.u32 32, %s16
        $region44: #{tpu_custom_call.1} parent=39 // pred_fallthru
          _
      $region40: #{tpu_custom_call.1} parent=5 // pred_fallthru
        _
      %p240 = scmp.le.s32.totalorder 1, %s16
      %p241 = scmp.lt.s32.totalorder %s16, 3
      %p242 = pnand %p240, %p241
      %p243 = pneg %p242
      // Predicated region
      $region45: #{tpu_custom_call.1} parent=5 // pred_check
        _
      $region46: #{tpu_custom_call.1} parent=5 // pred_check_branch
        %245 = sbr.rel (%p242) target = $region48
      $region47: #{tpu_custom_call.1} parent=5 // pred_region
        %s246 = ssub.s32 %s16, 1
        %s247 = smul.u32 32, %s21
        %p248 = scmp.lt.s32.totalorder %s247, 63
        %s249 = scalar_select %p248, %s247, 63
        %s250 = smul.addr %s249, 8
        %s251 = scalar_lea.vmem %s0, %s250
        %p252 = pneg %p42
        %p253 = pneg %p39
        %p254 = pneg %p63
        %p255 = pneg %p60
        %p256 = pneg %p84
        %p257 = pneg %p81
        %p258 = pneg %p105
        %p259 = pneg %p102
        %p260 = pneg %p126
        %p261 = pneg %p123
        %p262 = pneg %p147
        %p263 = pneg %p144
        %p264 = pneg %p168
        %p265 = pneg %p165
        %p266 = pneg %p194
        %p267 = pneg %p191
        %s268 = sand.u32 %s181, 1
        %s269 = scalar_lea.sflag [#allocation3], %s268
        %s270 = sand.u32 %s181, 1
        %s271 = smul.addr %s270, 256
        %s272 = scalar_lea.vmem [#allocation2], %s271
        %s273 = smul.u32 32, %s21
        %p274 = scmp.lt.s32.totalorder %s273, 63
        %s275 = scalar_select %p274, %s273, 63
        %s276 = smul.addr %s275, 8
        %s277 = scalar_lea.vmem %s0, %s276
        %s278 = smul.u32 32, %s21
        %s279 = smul.u32 32, %s21
        %v281 = vld [vmem:[%s277] sm:$0xff]
        %v282 = vld [vmem:[%s277 + $0x8] sm:$0xff]
        %v283 = vld [vmem:[%s277 + $0x10] sm:$0xff]
        %v284 = vld [vmem:[%s277 + $0x18] sm:$0xff]
        %v285 = vld [vmem:[%s277 + $0x20] sm:$0xff]
        %v286 = vld [vmem:[%s277 + $0x28] sm:$0xff]
        %v287 = vld [vmem:[%s277 + $0x30] sm:$0xff]
        %v288 = vld [vmem:[%s277 + $0x38] sm:$0xff]
        %v289 = vld [vmem:[%s277 + $0x40] sm:$0xff]
        %v290 = vld [vmem:[%s277 + $0x48] sm:$0xff]
        %v291 = vld [vmem:[%s277 + $0x50] sm:$0xff]
        %v292 = vld [vmem:[%s277 + $0x58] sm:$0xff]
        %v293 = vld [vmem:[%s277 + $0x60] sm:$0xff]
        %v294 = vld [vmem:[%s277 + $0x68] sm:$0xff]
        %v295 = vld [vmem:[%s277 + $0x70] sm:$0xff]
        %v296 = vld [vmem:[%s277 + $0x78] sm:$0xff]
        %v297 = vld [vmem:[%s277 + $0x80] sm:$0xff]
        %v298 = vld [vmem:[%s277 + $0x88] sm:$0xff]
        %v299 = vld [vmem:[%s277 + $0x90] sm:$0xff]
        %v300 = vld [vmem:[%s277 + $0x98] sm:$0xff]
        %v301 = vld [vmem:[%s277 + $0xa0] sm:$0xff]
        %v302 = vld [vmem:[%s277 + $0xa8] sm:$0xff]
        %v303 = vld [vmem:[%s277 + $0xb0] sm:$0xff]
        %v304 = vld [vmem:[%s277 + $0xb8] sm:$0xff]
        %v305 = vld [vmem:[%s277 + $0xc0] sm:$0xff]
        %v306 = vld [vmem:[%s277 + $0xc8] sm:$0xff]
        %v307 = vld [vmem:[%s277 + $0xd0] sm:$0xff]
        %v308 = vld [vmem:[%s277 + $0xd8] sm:$0xff]
        %v309 = vld [vmem:[%s277 + $0xe0] sm:$0xff]
        %v310 = vld [vmem:[%s277 + $0xe8] sm:$0xff]
        %v311 = vld [vmem:[%s277 + $0xf0] sm:$0xff]
        %v312 = vld [vmem:[%s277 + $0xf8] sm:$0xff]
        %v313 = vpack.c.bf16 %v282, %v281
        %v314 = vpack.c.bf16 %v284, %v283
        %v315 = vpack.c.bf16 %v286, %v285
        %v316 = vpack.c.bf16 %v288, %v287
        %v317 = vpack.c.bf16 %v290, %v289
        %v318 = vpack.c.bf16 %v292, %v291
        %v319 = vpack.c.bf16 %v294, %v293
        %v320 = vpack.c.bf16 %v296, %v295
        %v321 = vpack.c.bf16 %v298, %v297
        %v322 = vpack.c.bf16 %v300, %v299
        %v323 = vpack.c.bf16 %v302, %v301
        %v324 = vpack.c.bf16 %v304, %v303
        %v325 = vpack.c.bf16 %v306, %v305
        %v326 = vpack.c.bf16 %v308, %v307
        %v327 = vpack.c.bf16 %v310, %v309
        %v328 = vpack.c.bf16 %v312, %v311
        %v329 = vld [vmem:[%s1] sm:$0xf]
        %v330 = vld [vmem:[%s1 + $0x4] sm:$0xf]
        %v331 = vld [vmem:[%s2] sm:$0x1]
        %v333 = vperm.slane %v331, 0
        %v337 = vunpack.c.l.b16 %v329
        %v338 = vunpack.c.l.b16 %v330
        %v339 = vpack.c.b16 %v338, %v337
        %vm341 = vcmask 130048
        %v343 = vsel %vm341, %v313, 0
        %v346 = vsel %vm341, %v314, 0
        %v349 = vsel %vm341, %v315, 0
        %v352 = vsel %vm341, %v316, 0
        %v355 = vsel %vm341, %v317, 0
        %v358 = vsel %vm341, %v318, 0
        %v361 = vsel %vm341, %v319, 0
        %v364 = vsel %vm341, %v320, 0
        %v367 = vsel %vm341, %v321, 0
        %v370 = vsel %vm341, %v322, 0
        %v373 = vsel %vm341, %v323, 0
        %v376 = vsel %vm341, %v324, 0
        %v379 = vsel %vm341, %v325, 0
        %v382 = vsel %vm341, %v326, 0
        %v385 = vsel %vm341, %v327, 0
        %v388 = vsel %vm341, %v328, 0
        %390 = vmatpush.bf16.msra.mxu0 0
        %391 = vmatpush.bf16.msra.mxu0 0
        %392 = vmatpush.bf16.msra.mxu0 0
        %393 = vmatpush.bf16.msra.mxu0 0
        %394 = vmatpush.bf16.msra.mxu0 0
        %395 = vmatpush.bf16.msra.mxu0 0
        %396 = vmatpush.bf16.msra.mxu0 0
        %397 = vmatpush.bf16.msra.mxu0 %v339
        %398 = vmatmul.bf16.gmra.mxu0 %v343
        %v399 = vpop.f32.mrf.mxu0
        %v400 = vadd.f32 %v333, %v399
        %v401 = vpop.f32.mrf.mxu0
        %v402 = vadd.f32 %v333, %v401
        %403 = vmatmul.bf16.gmra.mxu0 %v346
        %v404 = vpop.f32.mrf.mxu0
        %v405 = vadd.f32 %v333, %v404
        %v406 = vpop.f32.mrf.mxu0
        %v407 = vadd.f32 %v333, %v406
        %408 = vmatmul.bf16.gmra.mxu0 %v349
        %v409 = vpop.f32.mrf.mxu0
        %v410 = vadd.f32 %v333, %v409
        %v411 = vpop.f32.mrf.mxu0
        %v412 = vadd.f32 %v333, %v411
        %413 = vmatmul.bf16.gmra.mxu0 %v352
        %v414 = vpop.f32.mrf.mxu0
        %v415 = vadd.f32 %v333, %v414
        %v416 = vpop.f32.mrf.mxu0
        %v417 = vadd.f32 %v333, %v416
        %418 = vmatmul.bf16.gmra.mxu0 %v355
        %v419 = vpop.f32.mrf.mxu0
        %v420 = vadd.f32 %v333, %v419
        %v421 = vpop.f32.mrf.mxu0
        %v422 = vadd.f32 %v333, %v421
        %423 = vmatmul.bf16.gmra.mxu0 %v358
        %v424 = vpop.f32.mrf.mxu0
        %v425 = vadd.f32 %v333, %v424
        %v426 = vpop.f32.mrf.mxu0
        %v427 = vadd.f32 %v333, %v426
        %428 = vmatmul.bf16.gmra.mxu0 %v361
        %v429 = vpop.f32.mrf.mxu0
        %v430 = vadd.f32 %v333, %v429
        %v431 = vpop.f32.mrf.mxu0
        %v432 = vadd.f32 %v333, %v431
        %433 = vmatmul.bf16.gmra.mxu0 %v364
        %v434 = vpop.f32.mrf.mxu0
        %v435 = vadd.f32 %v333, %v434
        %v436 = vpop.f32.mrf.mxu0
        %v437 = vadd.f32 %v333, %v436
        %438 = vmatmul.bf16.gmra.mxu0 %v367
        %v439 = vpop.f32.mrf.mxu0
        %v440 = vadd.f32 %v333, %v439
        %v441 = vpop.f32.mrf.mxu0
        %v442 = vadd.f32 %v333, %v441
        %443 = vmatmul.bf16.gmra.mxu0 %v370
        %v444 = vpop.f32.mrf.mxu0
        %v445 = vadd.f32 %v333, %v444
        %v446 = vpop.f32.mrf.mxu0
        %v447 = vadd.f32 %v333, %v446
        %448 = vmatmul.bf16.gmra.mxu0 %v373
        %v449 = vpop.f32.mrf.mxu0
        %v450 = vadd.f32 %v333, %v449
        %v451 = vpop.f32.mrf.mxu0
        %v452 = vadd.f32 %v333, %v451
        %453 = vmatmul.bf16.gmra.mxu0 %v376
        %v454 = vpop.f32.mrf.mxu0
        %v455 = vadd.f32 %v333, %v454
        %v456 = vpop.f32.mrf.mxu0
        %v457 = vadd.f32 %v333, %v456
        %458 = vmatmul.bf16.gmra.mxu0 %v379
        %v459 = vpop.f32.mrf.mxu0
        %v460 = vadd.f32 %v333, %v459
        %v461 = vpop.f32.mrf.mxu0
        %v462 = vadd.f32 %v333, %v461
        %463 = vmatmul.bf16.gmra.mxu0 %v382
        %v464 = vpop.f32.mrf.mxu0
        %v465 = vadd.f32 %v333, %v464
        %v466 = vpop.f32.mrf.mxu0
        %v467 = vadd.f32 %v333, %v466
        %468 = vmatmul.bf16.gmra.mxu0 %v385
        %v469 = vpop.f32.mrf.mxu0
        %v470 = vadd.f32 %v333, %v469
        %v471 = vpop.f32.mrf.mxu0
        %v472 = vadd.f32 %v333, %v471
        %473 = vmatmul.bf16.gmra.mxu0 %v388
        %v474 = vpop.f32.mrf.mxu0
        %v475 = vadd.f32 %v333, %v474
        %v476 = vpop.f32.mrf.mxu0
        %v477 = vadd.f32 %v333, %v476
        %478 = vdwg.mxu0
        %v479 = vmax.f32 %v400, 0.0
        %v480 = vmax.f32 %v402, 0.0
        %v481 = vmax.f32 %v405, 0.0
        %v482 = vmax.f32 %v407, 0.0
        %v483 = vmax.f32 %v410, 0.0
        %v484 = vmax.f32 %v412, 0.0
        %v485 = vmax.f32 %v415, 0.0
        %v486 = vmax.f32 %v417, 0.0
        %v487 = vmax.f32 %v420, 0.0
        %v488 = vmax.f32 %v422, 0.0
        %v489 = vmax.f32 %v425, 0.0
        %v490 = vmax.f32 %v427, 0.0
        %v491 = vmax.f32 %v430, 0.0
        %v492 = vmax.f32 %v432, 0.0
        %v493 = vmax.f32 %v435, 0.0
        %v494 = vmax.f32 %v437, 0.0
        %v495 = vmax.f32 %v440, 0.0
        %v496 = vmax.f32 %v442, 0.0
        %v497 = vmax.f32 %v445, 0.0
        %v498 = vmax.f32 %v447, 0.0
        %v499 = vmax.f32 %v450, 0.0
        %v500 = vmax.f32 %v452, 0.0
        %v501 = vmax.f32 %v455, 0.0
        %v502 = vmax.f32 %v457, 0.0
        %v503 = vmax.f32 %v460, 0.0
        %v504 = vmax.f32 %v462, 0.0
        %v505 = vmax.f32 %v465, 0.0
        %v506 = vmax.f32 %v467, 0.0
        %v507 = vmax.f32 %v470, 0.0
        %v508 = vmax.f32 %v472, 0.0
        %v509 = vmax.f32 %v475, 0.0
        %v510 = vmax.f32 %v477, 0.0
        %v511 = vpack.c.bf16 %v480, %v479
        %v512 = vpack.c.bf16 %v482, %v481
        %v513 = vpack.c.bf16 %v484, %v483
        %v514 = vpack.c.bf16 %v486, %v485
        %v515 = vpack.c.bf16 %v488, %v487
        %v516 = vpack.c.bf16 %v490, %v489
        %v517 = vpack.c.bf16 %v492, %v491
        %v518 = vpack.c.bf16 %v494, %v493
        %v519 = vpack.c.bf16 %v496, %v495
        %v520 = vpack.c.bf16 %v498, %v497
        %v521 = vpack.c.bf16 %v500, %v499
        %v522 = vpack.c.bf16 %v502, %v501
        %v523 = vpack.c.bf16 %v504, %v503
        %v524 = vpack.c.bf16 %v506, %v505
        %v525 = vpack.c.bf16 %v508, %v507
        %v526 = vpack.c.bf16 %v510, %v509
        %v527 = vld [vmem:[%s3] sm:$0xf]
        %v528 = vld [vmem:[%s3 + $0x4] sm:$0xf]
        %v529 = vld [vmem:[%s3 + $0x8] sm:$0xf]
        %v530 = vld [vmem:[%s3 + $0xc] sm:$0xf]
        %v531 = vld [vmem:[%s3 + $0x10] sm:$0xf]
        %v532 = vld [vmem:[%s3 + $0x14] sm:$0xf]
        %v533 = vld [vmem:[%s3 + $0x18] sm:$0xf]
        %v534 = vld [vmem:[%s3 + $0x1c] sm:$0xf]
        %v535 = vld [vmem:[%s3 + $0x20] sm:$0xf]
        %v536 = vld [vmem:[%s3 + $0x24] sm:$0xf]
        %v537 = vld [vmem:[%s3 + $0x28] sm:$0xf]
        %v538 = vld [vmem:[%s3 + $0x2c] sm:$0xf]
        %v539 = vld [vmem:[%s3 + $0x30] sm:$0xf]
        %v540 = vld [vmem:[%s3 + $0x34] sm:$0xf]
        %v541 = vld [vmem:[%s3 + $0x38] sm:$0xf]
        %v542 = vld [vmem:[%s3 + $0x3c] sm:$0xf]
        %v543 = vld [vmem:[%s4] sm:$0x1]
        %v545 = vperm.slane %v543, 0
        %v563 = vunpack.c.l.b16 %v527
        %v564 = vunpack.c.l.b16 %v528
        %v565 = vunpack.c.l.b16 %v529
        %v566 = vunpack.c.l.b16 %v530
        %v567 = vunpack.c.l.b16 %v531
        %v568 = vunpack.c.l.b16 %v532
        %v569 = vunpack.c.l.b16 %v533
        %v570 = vunpack.c.l.b16 %v534
        %v571 = vunpack.c.l.b16 %v535
        %v572 = vunpack.c.l.b16 %v536
        %v573 = vunpack.c.l.b16 %v537
        %v574 = vunpack.c.l.b16 %v538
        %v575 = vunpack.c.l.b16 %v539
        %v576 = vunpack.c.l.b16 %v540
        %v577 = vunpack.c.l.b16 %v541
        %v578 = vunpack.c.l.b16 %v542
        %v579 = vpack.c.b16 %v564, %v563
        %v580 = vpack.c.b16 %v566, %v565
        %v581 = vpack.c.b16 %v568, %v567
        %v582 = vpack.c.b16 %v570, %v569
        %v583 = vpack.c.b16 %v572, %v571
        %v584 = vpack.c.b16 %v574, %v573
        %v585 = vpack.c.b16 %v576, %v575
        %v586 = vpack.c.b16 %v578, %v577
        %595 = vmatpush.bf16.msra.mxu0 %v586
        %596 = vmatpush.bf16.msra.mxu0 %v585
        %597 = vmatpush.bf16.msra.mxu0 %v584
        %598 = vmatpush.bf16.msra.mxu0 %v583
        %599 = vmatpush.bf16.msra.mxu0 %v582
        %600 = vmatpush.bf16.msra.mxu0 %v581
        %601 = vmatpush.bf16.msra.mxu0 %v580
        %602 = vmatpush.bf16.msra.mxu0 %v579
        %603 = vmatmul.bf16.gmra.mxu0 %v511
        %v604 = vpop.f32.mrf.mxu0
        %v605 = vadd.f32 %v545, %v604
        %v606 = vpop.f32.mrf.mxu0
        %v607 = vadd.f32 %v545, %v606
        %608 = vmatmul.bf16.gmra.mxu0 %v512
        %v609 = vpop.f32.mrf.mxu0
        %v610 = vadd.f32 %v545, %v609
        %v611 = vpop.f32.mrf.mxu0
        %v612 = vadd.f32 %v545, %v611
        %613 = vmatmul.bf16.gmra.mxu0 %v513
        %v614 = vpop.f32.mrf.mxu0
        %v615 = vadd.f32 %v545, %v614
        %v616 = vpop.f32.mrf.mxu0
        %v617 = vadd.f32 %v545, %v616
        %618 = vmatmul.bf16.gmra.mxu0 %v514
        %v619 = vpop.f32.mrf.mxu0
        %v620 = vadd.f32 %v545, %v619
        %v621 = vpop.f32.mrf.mxu0
        %v622 = vadd.f32 %v545, %v621
        %623 = vmatmul.bf16.gmra.mxu0 %v515
        %v624 = vpop.f32.mrf.mxu0
        %v625 = vadd.f32 %v545, %v624
        %v626 = vpop.f32.mrf.mxu0
        %v627 = vadd.f32 %v545, %v626
        %628 = vmatmul.bf16.gmra.mxu0 %v516
        %v629 = vpop.f32.mrf.mxu0
        %v630 = vadd.f32 %v545, %v629
        %v631 = vpop.f32.mrf.mxu0
        %v632 = vadd.f32 %v545, %v631
        %633 = vmatmul.bf16.gmra.mxu0 %v517
        %v634 = vpop.f32.mrf.mxu0
        %v635 = vadd.f32 %v545, %v634
        %v636 = vpop.f32.mrf.mxu0
        %v637 = vadd.f32 %v545, %v636
        %638 = vmatmul.bf16.gmra.mxu0 %v518
        %v639 = vpop.f32.mrf.mxu0
        %v640 = vadd.f32 %v545, %v639
        %v641 = vpop.f32.mrf.mxu0
        %v642 = vadd.f32 %v545, %v641
        %643 = vmatmul.bf16.gmra.mxu0 %v519
        %v644 = vpop.f32.mrf.mxu0
        %v645 = vadd.f32 %v545, %v644
        %v646 = vpop.f32.mrf.mxu0
        %v647 = vadd.f32 %v545, %v646
        %648 = vmatmul.bf16.gmra.mxu0 %v520
        %v649 = vpop.f32.mrf.mxu0
        %v650 = vadd.f32 %v545, %v649
        %v651 = vpop.f32.mrf.mxu0
        %v652 = vadd.f32 %v545, %v651
        %653 = vmatmul.bf16.gmra.mxu0 %v521
        %v654 = vpop.f32.mrf.mxu0
        %v655 = vadd.f32 %v545, %v654
        %v656 = vpop.f32.mrf.mxu0
        %v657 = vadd.f32 %v545, %v656
        %658 = vmatmul.bf16.gmra.mxu0 %v522
        %v659 = vpop.f32.mrf.mxu0
        %v660 = vadd.f32 %v545, %v659
        %v661 = vpop.f32.mrf.mxu0
        %v662 = vadd.f32 %v545, %v661
        %663 = vmatmul.bf16.gmra.mxu0 %v523
        %v664 = vpop.f32.mrf.mxu0
        %v665 = vadd.f32 %v545, %v664
        %v666 = vpop.f32.mrf.mxu0
        %v667 = vadd.f32 %v545, %v666
        %668 = vmatmul.bf16.gmra.mxu0 %v524
        %v669 = vpop.f32.mrf.mxu0
        %v670 = vadd.f32 %v545, %v669
        %v671 = vpop.f32.mrf.mxu0
        %v672 = vadd.f32 %v545, %v671
        %673 = vmatmul.bf16.gmra.mxu0 %v525
        %v674 = vpop.f32.mrf.mxu0
        %v675 = vadd.f32 %v545, %v674
        %v676 = vpop.f32.mrf.mxu0
        %v677 = vadd.f32 %v545, %v676
        %678 = vmatmul.bf16.gmra.mxu0 %v526
        %v679 = vpop.f32.mrf.mxu0
        %v680 = vadd.f32 %v545, %v679
        %v681 = vpop.f32.mrf.mxu0
        %v682 = vadd.f32 %v545, %v681
        %683 = vdwg.mxu0
        %v684 = vmax.f32 %v605, 0.0
        %v685 = vmax.f32 %v607, 0.0
        %v686 = vmax.f32 %v610, 0.0
        %v687 = vmax.f32 %v612, 0.0
        %v688 = vmax.f32 %v615, 0.0
        %v689 = vmax.f32 %v617, 0.0
        %v690 = vmax.f32 %v620, 0.0
        %v691 = vmax.f32 %v622, 0.0
        %v692 = vmax.f32 %v625, 0.0
        %v693 = vmax.f32 %v627, 0.0
        %v694 = vmax.f32 %v630, 0.0
        %v695 = vmax.f32 %v632, 0.0
        %v696 = vmax.f32 %v635, 0.0
        %v697 = vmax.f32 %v637, 0.0
        %v698 = vmax.f32 %v640, 0.0
        %v699 = vmax.f32 %v642, 0.0
        %v700 = vmax.f32 %v645, 0.0
        %v701 = vmax.f32 %v647, 0.0
        %v702 = vmax.f32 %v650, 0.0
        %v703 = vmax.f32 %v652, 0.0
        %v704 = vmax.f32 %v655, 0.0
        %v705 = vmax.f32 %v657, 0.0
        %v706 = vmax.f32 %v660, 0.0
        %v707 = vmax.f32 %v662, 0.0
        %v708 = vmax.f32 %v665, 0.0
        %v709 = vmax.f32 %v667, 0.0
        %v710 = vmax.f32 %v670, 0.0
        %v711 = vmax.f32 %v672, 0.0
        %v712 = vmax.f32 %v675, 0.0
        %v713 = vmax.f32 %v677, 0.0
        %v714 = vmax.f32 %v680, 0.0
        %v715 = vmax.f32 %v682, 0.0
        %v716 = vpack.c.bf16 %v685, %v684
        %v717 = vpack.c.bf16 %v687, %v686
        %v718 = vpack.c.bf16 %v689, %v688
        %v719 = vpack.c.bf16 %v691, %v690
        %v720 = vpack.c.bf16 %v693, %v692
        %v721 = vpack.c.bf16 %v695, %v694
        %v722 = vpack.c.bf16 %v697, %v696
        %v723 = vpack.c.bf16 %v699, %v698
        %v724 = vpack.c.bf16 %v701, %v700
        %v725 = vpack.c.bf16 %v703, %v702
        %v726 = vpack.c.bf16 %v705, %v704
        %v727 = vpack.c.bf16 %v707, %v706
        %v728 = vpack.c.bf16 %v709, %v708
        %v729 = vpack.c.bf16 %v711, %v710
        %v730 = vpack.c.bf16 %v713, %v712
        %v731 = vpack.c.bf16 %v715, %v714
        %s732 = scalar_lea.vmem %s3, 64
        %v733 = vld [vmem:[%s732] sm:$0xf]
        %v734 = vld [vmem:[%s732 + $0x4] sm:$0xf]
        %v735 = vld [vmem:[%s732 + $0x8] sm:$0xf]
        %v736 = vld [vmem:[%s732 + $0xc] sm:$0xf]
        %v737 = vld [vmem:[%s732 + $0x10] sm:$0xf]
        %v738 = vld [vmem:[%s732 + $0x14] sm:$0xf]
        %v739 = vld [vmem:[%s732 + $0x18] sm:$0xf]
        %v740 = vld [vmem:[%s732 + $0x1c] sm:$0xf]
        %v741 = vld [vmem:[%s732 + $0x20] sm:$0xf]
        %v742 = vld [vmem:[%s732 + $0x24] sm:$0xf]
        %v743 = vld [vmem:[%s732 + $0x28] sm:$0xf]
        %v744 = vld [vmem:[%s732 + $0x2c] sm:$0xf]
        %v745 = vld [vmem:[%s732 + $0x30] sm:$0xf]
        %v746 = vld [vmem:[%s732 + $0x34] sm:$0xf]
        %v747 = vld [vmem:[%s732 + $0x38] sm:$0xf]
        %v748 = vld [vmem:[%s732 + $0x3c] sm:$0xf]
        %s749 = scalar_lea.vmem %s4, 1
        %v750 = vld [vmem:[%s749] sm:$0x1]
        %v752 = vperm.slane %v750, 0
        %v770 = vunpack.c.l.b16 %v733
        %v771 = vunpack.c.l.b16 %v734
        %v772 = vunpack.c.l.b16 %v735
        %v773 = vunpack.c.l.b16 %v736
        %v774 = vunpack.c.l.b16 %v737
        %v775 = vunpack.c.l.b16 %v738
        %v776 = vunpack.c.l.b16 %v739
        %v777 = vunpack.c.l.b16 %v740
        %v778 = vunpack.c.l.b16 %v741
        %v779 = vunpack.c.l.b16 %v742
        %v780 = vunpack.c.l.b16 %v743
        %v781 = vunpack.c.l.b16 %v744
        %v782 = vunpack.c.l.b16 %v745
        %v783 = vunpack.c.l.b16 %v746
        %v784 = vunpack.c.l.b16 %v747
        %v785 = vunpack.c.l.b16 %v748
        %v786 = vpack.c.b16 %v771, %v770
        %v787 = vpack.c.b16 %v773, %v772
        %v788 = vpack.c.b16 %v775, %v774
        %v789 = vpack.c.b16 %v777, %v776
        %v790 = vpack.c.b16 %v779, %v778
        %v791 = vpack.c.b16 %v781, %v780
        %v792 = vpack.c.b16 %v783, %v782
        %v793 = vpack.c.b16 %v785, %v784
        %802 = vmatpush.bf16.msra.mxu0 %v793
        %803 = vmatpush.bf16.msra.mxu0 %v792
        %804 = vmatpush.bf16.msra.mxu0 %v791
        %805 = vmatpush.bf16.msra.mxu0 %v790
        %806 = vmatpush.bf16.msra.mxu0 %v789
        %807 = vmatpush.bf16.msra.mxu0 %v788
        %808 = vmatpush.bf16.msra.mxu0 %v787
        %809 = vmatpush.bf16.msra.mxu0 %v786
        %810 = vmatmul.bf16.gmra.mxu0 %v716
        %v811 = vpop.f32.mrf.mxu0
        %v812 = vadd.f32 %v752, %v811
        %v813 = vpop.f32.mrf.mxu0
        %v814 = vadd.f32 %v752, %v813
        %815 = vmatmul.bf16.gmra.mxu0 %v717
        %v816 = vpop.f32.mrf.mxu0
        %v817 = vadd.f32 %v752, %v816
        %v818 = vpop.f32.mrf.mxu0
        %v819 = vadd.f32 %v752, %v818
        %820 = vmatmul.bf16.gmra.mxu0 %v718
        %v821 = vpop.f32.mrf.mxu0
        %v822 = vadd.f32 %v752, %v821
        %v823 = vpop.f32.mrf.mxu0
        %v824 = vadd.f32 %v752, %v823
        %825 = vmatmul.bf16.gmra.mxu0 %v719
        %v826 = vpop.f32.mrf.mxu0
        %v827 = vadd.f32 %v752, %v826
        %v828 = vpop.f32.mrf.mxu0
        %v829 = vadd.f32 %v752, %v828
        %830 = vmatmul.bf16.gmra.mxu0 %v720
        %v831 = vpop.f32.mrf.mxu0
        %v832 = vadd.f32 %v752, %v831
        %v833 = vpop.f32.mrf.mxu0
        %v834 = vadd.f32 %v752, %v833
        %835 = vmatmul.bf16.gmra.mxu0 %v721
        %v836 = vpop.f32.mrf.mxu0
        %v837 = vadd.f32 %v752, %v836
        %v838 = vpop.f32.mrf.mxu0
        %v839 = vadd.f32 %v752, %v838
        %840 = vmatmul.bf16.gmra.mxu0 %v722
        %v841 = vpop.f32.mrf.mxu0
        %v842 = vadd.f32 %v752, %v841
        %v843 = vpop.f32.mrf.mxu0
        %v844 = vadd.f32 %v752, %v843
        %845 = vmatmul.bf16.gmra.mxu0 %v723
        %v846 = vpop.f32.mrf.mxu0
        %v847 = vadd.f32 %v752, %v846
        %v848 = vpop.f32.mrf.mxu0
        %v849 = vadd.f32 %v752, %v848
        %850 = vmatmul.bf16.gmra.mxu0 %v724
        %v851 = vpop.f32.mrf.mxu0
        %v852 = vadd.f32 %v752, %v851
        %v853 = vpop.f32.mrf.mxu0
        %v854 = vadd.f32 %v752, %v853
        %855 = vmatmul.bf16.gmra.mxu0 %v725
        %v856 = vpop.f32.mrf.mxu0
        %v857 = vadd.f32 %v752, %v856
        %v858 = vpop.f32.mrf.mxu0
        %v859 = vadd.f32 %v752, %v858
        %860 = vmatmul.bf16.gmra.mxu0 %v726
        %v861 = vpop.f32.mrf.mxu0
        %v862 = vadd.f32 %v752, %v861
        %v863 = vpop.f32.mrf.mxu0
        %v864 = vadd.f32 %v752, %v863
        %865 = vmatmul.bf16.gmra.mxu0 %v727
        %v866 = vpop.f32.mrf.mxu0
        %v867 = vadd.f32 %v752, %v866
        %v868 = vpop.f32.mrf.mxu0
        %v869 = vadd.f32 %v752, %v868
        %870 = vmatmul.bf16.gmra.mxu0 %v728
        %v871 = vpop.f32.mrf.mxu0
        %v872 = vadd.f32 %v752, %v871
        %v873 = vpop.f32.mrf.mxu0
        %v874 = vadd.f32 %v752, %v873
        %875 = vmatmul.bf16.gmra.mxu0 %v729
        %v876 = vpop.f32.mrf.mxu0
        %v877 = vadd.f32 %v752, %v876
        %v878 = vpop.f32.mrf.mxu0
        %v879 = vadd.f32 %v752, %v878
        %880 = vmatmul.bf16.gmra.mxu0 %v730
        %v881 = vpop.f32.mrf.mxu0
        %v882 = vadd.f32 %v752, %v881
        %v883 = vpop.f32.mrf.mxu0
        %v884 = vadd.f32 %v752, %v883
        %885 = vmatmul.bf16.gmra.mxu0 %v731
        %v886 = vpop.f32.mrf.mxu0
        %v887 = vadd.f32 %v752, %v886
        %v888 = vpop.f32.mrf.mxu0
        %v889 = vadd.f32 %v752, %v888
        %890 = vdwg.mxu0
        %v891 = vmax.f32 %v812, 0.0
        %v892 = vmax.f32 %v814, 0.0
        %v893 = vmax.f32 %v817, 0.0
        %v894 = vmax.f32 %v819, 0.0
        %v895 = vmax.f32 %v822, 0.0
        %v896 = vmax.f32 %v824, 0.0
        %v897 = vmax.f32 %v827, 0.0
        %v898 = vmax.f32 %v829, 0.0
        %v899 = vmax.f32 %v832, 0.0
        %v900 = vmax.f32 %v834, 0.0
        %v901 = vmax.f32 %v837, 0.0
        %v902 = vmax.f32 %v839, 0.0
        %v903 = vmax.f32 %v842, 0.0
        %v904 = vmax.f32 %v844, 0.0
        %v905 = vmax.f32 %v847, 0.0
        %v906 = vmax.f32 %v849, 0.0
        %v907 = vmax.f32 %v852, 0.0
        %v908 = vmax.f32 %v854, 0.0
        %v909 = vmax.f32 %v857, 0.0
        %v910 = vmax.f32 %v859, 0.0
        %v911 = vmax.f32 %v862, 0.0
        %v912 = vmax.f32 %v864, 0.0
        %v913 = vmax.f32 %v867, 0.0
        %v914 = vmax.f32 %v869, 0.0
        %v915 = vmax.f32 %v872, 0.0
        %v916 = vmax.f32 %v874, 0.0
        %v917 = vmax.f32 %v877, 0.0
        %v918 = vmax.f32 %v879, 0.0
        %v919 = vmax.f32 %v882, 0.0
        %v920 = vmax.f32 %v884, 0.0
        %v921 = vmax.f32 %v887, 0.0
        %v922 = vmax.f32 %v889, 0.0
        %v923 = vpack.c.bf16 %v892, %v891
        %v924 = vpack.c.bf16 %v894, %v893
        %v925 = vpack.c.bf16 %v896, %v895
        %v926 = vpack.c.bf16 %v898, %v897
        %v927 = vpack.c.bf16 %v900, %v899
        %v928 = vpack.c.bf16 %v902, %v901
        %v929 = vpack.c.bf16 %v904, %v903
        %v930 = vpack.c.bf16 %v906, %v905
        %v931 = vpack.c.bf16 %v908, %v907
        %v932 = vpack.c.bf16 %v910, %v909
        %v933 = vpack.c.bf16 %v912, %v911
        %v934 = vpack.c.bf16 %v914, %v913
        %v935 = vpack.c.bf16 %v916, %v915
        %v936 = vpack.c.bf16 %v918, %v917
        %v937 = vpack.c.bf16 %v920, %v919
        %v938 = vpack.c.bf16 %v922, %v921
        %v939 = vld [vmem:[%s5] sm:$0xf]
        %v940 = vld [vmem:[%s5 + $0x4] sm:$0xf]
        %v941 = vld [vmem:[%s5 + $0x8] sm:$0xf]
        %v942 = vld [vmem:[%s5 + $0xc] sm:$0xf]
        %v943 = vld [vmem:[%s5 + $0x10] sm:$0xf]
        %v944 = vld [vmem:[%s5 + $0x14] sm:$0xf]
        %v945 = vld [vmem:[%s5 + $0x18] sm:$0xf]
        %v946 = vld [vmem:[%s5 + $0x1c] sm:$0xf]
        %v947 = vld [vmem:[%s5 + $0x20] sm:$0xf]
        %v948 = vld [vmem:[%s5 + $0x24] sm:$0xf]
        %v949 = vld [vmem:[%s5 + $0x28] sm:$0xf]
        %v950 = vld [vmem:[%s5 + $0x2c] sm:$0xf]
        %v951 = vld [vmem:[%s5 + $0x30] sm:$0xf]
        %v952 = vld [vmem:[%s5 + $0x34] sm:$0xf]
        %v953 = vld [vmem:[%s5 + $0x38] sm:$0xf]
        %v954 = vld [vmem:[%s5 + $0x3c] sm:$0xf]
        %v955 = vld [vmem:[%s6] sm:$0x1]
        %v957 = vperm.slane %v955, 0
        %v975 = vunpack.c.l.b16 %v939
        %v976 = vunpack.c.l.b16 %v940
        %v977 = vunpack.c.l.b16 %v941
        %v978 = vunpack.c.l.b16 %v942
        %v979 = vunpack.c.l.b16 %v943
        %v980 = vunpack.c.l.b16 %v944
        %v981 = vunpack.c.l.b16 %v945
        %v982 = vunpack.c.l.b16 %v946
        %v983 = vunpack.c.l.b16 %v947
        %v984 = vunpack.c.l.b16 %v948
        %v985 = vunpack.c.l.b16 %v949
        %v986 = vunpack.c.l.b16 %v950
        %v987 = vunpack.c.l.b16 %v951
        %v988 = vunpack.c.l.b16 %v952
        %v989 = vunpack.c.l.b16 %v953
        %v990 = vunpack.c.l.b16 %v954
        %v991 = vpack.c.b16 %v976, %v975
        %v992 = vpack.c.b16 %v978, %v977
        %v993 = vpack.c.b16 %v980, %v979
        %v994 = vpack.c.b16 %v982, %v981
        %v995 = vpack.c.b16 %v984, %v983
        %v996 = vpack.c.b16 %v986, %v985
        %v997 = vpack.c.b16 %v988, %v987
        %v998 = vpack.c.b16 %v990, %v989
        %1007 = vmatpush.bf16.msra.mxu0 %v998
        %1008 = vmatpush.bf16.msra.mxu0 %v997
        %1009 = vmatpush.bf16.msra.mxu0 %v996
        %1010 = vmatpush.bf16.msra.mxu0 %v995
        %1011 = vmatpush.bf16.msra.mxu0 %v994
        %1012 = vmatpush.bf16.msra.mxu0 %v993
        %1013 = vmatpush.bf16.msra.mxu0 %v992
        %1014 = vmatpush.bf16.msra.mxu0 %v991
        %1015 = vmatmul.bf16.gmra.mxu0 %v923
        %v1016 = vpop.f32.mrf.mxu0
        %v1017 = vadd.f32 %v957, %v1016
        %v1018 = vpop.f32.mrf.mxu0
        %v1019 = vadd.f32 %v957, %v1018
        %1020 = vmatmul.bf16.gmra.mxu0 %v924
        %v1021 = vpop.f32.mrf.mxu0
        %v1022 = vadd.f32 %v957, %v1021
        %v1023 = vpop.f32.mrf.mxu0
        %v1024 = vadd.f32 %v957, %v1023
        %1025 = vmatmul.bf16.gmra.mxu0 %v925
        %v1026 = vpop.f32.mrf.mxu0
        %v1027 = vadd.f32 %v957, %v1026
        %v1028 = vpop.f32.mrf.mxu0
        %v1029 = vadd.f32 %v957, %v1028
        %1030 = vmatmul.bf16.gmra.mxu0 %v926
        %v1031 = vpop.f32.mrf.mxu0
        %v1032 = vadd.f32 %v957, %v1031
        %v1033 = vpop.f32.mrf.mxu0
        %v1034 = vadd.f32 %v957, %v1033
        %1035 = vmatmul.bf16.gmra.mxu0 %v927
        %v1036 = vpop.f32.mrf.mxu0
        %v1037 = vadd.f32 %v957, %v1036
        %v1038 = vpop.f32.mrf.mxu0
        %v1039 = vadd.f32 %v957, %v1038
        %1040 = vmatmul.bf16.gmra.mxu0 %v928
        %v1041 = vpop.f32.mrf.mxu0
        %v1042 = vadd.f32 %v957, %v1041
        %v1043 = vpop.f32.mrf.mxu0
        %v1044 = vadd.f32 %v957, %v1043
        %1045 = vmatmul.bf16.gmra.mxu0 %v929
        %v1046 = vpop.f32.mrf.mxu0
        %v1047 = vadd.f32 %v957, %v1046
        %v1048 = vpop.f32.mrf.mxu0
        %v1049 = vadd.f32 %v957, %v1048
        %1050 = vmatmul.bf16.gmra.mxu0 %v930
        %v1051 = vpop.f32.mrf.mxu0
        %v1052 = vadd.f32 %v957, %v1051
        %v1053 = vpop.f32.mrf.mxu0
        %v1054 = vadd.f32 %v957, %v1053
        %1055 = vmatmul.bf16.gmra.mxu0 %v931
        %v1056 = vpop.f32.mrf.mxu0
        %v1057 = vadd.f32 %v957, %v1056
        %v1058 = vpop.f32.mrf.mxu0
        %v1059 = vadd.f32 %v957, %v1058
        %1060 = vmatmul.bf16.gmra.mxu0 %v932
        %v1061 = vpop.f32.mrf.mxu0
        %v1062 = vadd.f32 %v957, %v1061
        %v1063 = vpop.f32.mrf.mxu0
        %v1064 = vadd.f32 %v957, %v1063
        %1065 = vmatmul.bf16.gmra.mxu0 %v933
        %v1066 = vpop.f32.mrf.mxu0
        %v1067 = vadd.f32 %v957, %v1066
        %v1068 = vpop.f32.mrf.mxu0
        %v1069 = vadd.f32 %v957, %v1068
        %1070 = vmatmul.bf16.gmra.mxu0 %v934
        %v1071 = vpop.f32.mrf.mxu0
        %v1072 = vadd.f32 %v957, %v1071
        %v1073 = vpop.f32.mrf.mxu0
        %v1074 = vadd.f32 %v957, %v1073
        %1075 = vmatmul.bf16.gmra.mxu0 %v935
        %v1076 = vpop.f32.mrf.mxu0
        %v1077 = vadd.f32 %v957, %v1076
        %v1078 = vpop.f32.mrf.mxu0
        %v1079 = vadd.f32 %v957, %v1078
        %1080 = vmatmul.bf16.gmra.mxu0 %v936
        %v1081 = vpop.f32.mrf.mxu0
        %v1082 = vadd.f32 %v957, %v1081
        %v1083 = vpop.f32.mrf.mxu0
        %v1084 = vadd.f32 %v957, %v1083
        %1085 = vmatmul.bf16.gmra.mxu0 %v937
        %v1086 = vpop.f32.mrf.mxu0
        %v1087 = vadd.f32 %v957, %v1086
        %v1088 = vpop.f32.mrf.mxu0
        %v1089 = vadd.f32 %v957, %v1088
        %1090 = vmatmul.bf16.gmra.mxu0 %v938
        %v1091 = vpop.f32.mrf.mxu0
        %v1092 = vadd.f32 %v957, %v1091
        %v1093 = vpop.f32.mrf.mxu0
        %v1094 = vadd.f32 %v957, %v1093
        %1095 = vdwg.mxu0
        %1096 = vst [vmem:[%s272] sm:$0xff] %v1017
        %1097 = vst [vmem:[%s272 + $0x8] sm:$0xff] %v1019
        %1098 = vst [vmem:[%s272 + $0x10] sm:$0xff] %v1022
        %1099 = vst [vmem:[%s272 + $0x18] sm:$0xff] %v1024
        %1100 = vst [vmem:[%s272 + $0x20] sm:$0xff] %v1027
        %1101 = vst [vmem:[%s272 + $0x28] sm:$0xff] %v1029
        %1102 = vst [vmem:[%s272 + $0x30] sm:$0xff] %v1032
        %1103 = vst [vmem:[%s272 + $0x38] sm:$0xff] %v1034
        %1104 = vst [vmem:[%s272 + $0x40] sm:$0xff] %v1037
        %1105 = vst [vmem:[%s272 + $0x48] sm:$0xff] %v1039
        %1106 = vst [vmem:[%s272 + $0x50] sm:$0xff] %v1042
        %1107 = vst [vmem:[%s272 + $0x58] sm:$0xff] %v1044
        %1108 = vst [vmem:[%s272 + $0x60] sm:$0xff] %v1047
        %1109 = vst [vmem:[%s272 + $0x68] sm:$0xff] %v1049
        %1110 = vst [vmem:[%s272 + $0x70] sm:$0xff] %v1052
        %1111 = vst [vmem:[%s272 + $0x78] sm:$0xff] %v1054
        %1112 = vst [vmem:[%s272 + $0x80] sm:$0xff] %v1057
        %1113 = vst [vmem:[%s272 + $0x88] sm:$0xff] %v1059
        %1114 = vst [vmem:[%s272 + $0x90] sm:$0xff] %v1062
        %1115 = vst [vmem:[%s272 + $0x98] sm:$0xff] %v1064
        %1116 = vst [vmem:[%s272 + $0xa0] sm:$0xff] %v1067
        %1117 = vst [vmem:[%s272 + $0xa8] sm:$0xff] %v1069
        %1118 = vst [vmem:[%s272 + $0xb0] sm:$0xff] %v1072
        %1119 = vst [vmem:[%s272 + $0xb8] sm:$0xff] %v1074
        %1120 = vst [vmem:[%s272 + $0xc0] sm:$0xff] %v1077
        %1121 = vst [vmem:[%s272 + $0xc8] sm:$0xff] %v1079
        %1122 = vst [vmem:[%s272 + $0xd0] sm:$0xff] %v1082
        %1123 = vst [vmem:[%s272 + $0xd8] sm:$0xff] %v1084
        %1124 = vst [vmem:[%s272 + $0xe0] sm:$0xff] %v1087
        %1125 = vst [vmem:[%s272 + $0xe8] sm:$0xff] %v1089
        %1126 = vst [vmem:[%s272 + $0xf0] sm:$0xff] %v1092
        %1127 = vst [vmem:[%s272 + $0xf8] sm:$0xff] %v1094
        %s1128 = sand.u32 %s181, 1
        %s1129 = scalar_lea.sflag [#allocation3], %s1128
        %s1130 = sand.u32 %s181, 1
        %s1131 = smul.addr %s1130, 256
        %s1132 = scalar_lea.vmem [#allocation2], %s1131
        // Predicated region
        $region49: #{tpu_custom_call.1} parent=47 // pred_check
          %p1133 = pneg %p191
        $region50: #{tpu_custom_call.1} parent=47 // pred_check_branch
          %1135 = sbr.rel (%p1133) target = $region52
        $region51: #{tpu_custom_call.1} parent=47 // pred_region
          %s1136 = smul.u32 32, %s21
          %1138 = vsyncadd %s1129, 0
          %s1139 = smul.addr %s1136, 8
          %s1140 = scalar_lea.hbm %s7, %s1139
          %s1141 = sshll.u32 %s1132, 4
          %s1142 = int_to_ptr.vmem [resolvable:$true] %s1141
          %s1143 = sshll.u32 %s1140, 4
          %s1144 = int_to_ptr.hbm [resolvable:$true] %s1143
          %1149 = dma.vmem_to_hbm [thread:$0]  %s1142, 4096, %s1144, %s1129, 128, 128, 8
        $region52: #{tpu_custom_call.1} parent=47 // pred_fallthru
          _
      $region48: #{tpu_custom_call.1} parent=5 // pred_fallthru
        _
      %p1150 = scmp.le.s32.totalorder 2, %s16
      // Predicated region
      $region53: #{tpu_custom_call.1} parent=5 // pred_check
        %p1151 = pneg %p1150
      $region54: #{tpu_custom_call.1} parent=5 // pred_check_branch
        %1153 = sbr.rel (%p1151) target = $region56
      $region55: #{tpu_custom_call.1} parent=5 // pred_region
        %s1154 = ssub.s32 %s16, 2
        // Predicated region
        $region57: #{tpu_custom_call.1} parent=55 // pred_check
          %p1155 = pneg %p197
        $region58: #{tpu_custom_call.1} parent=55 // pred_check_branch
          %1157 = sbr.rel (%p1155) target = $region60
        $region59: #{tpu_custom_call.1} parent=55 // pred_region
          %s1158 = sand.u32 %s182, 1
          %s1159 = scalar_lea.sflag [#allocation3], %s1158
          %s1160 = sand.u32 %s182, 1
          %s1161 = smul.addr %s1160, 256
          %s1162 = scalar_lea.vmem [#allocation2], %s1161
          %1164 = dma.done %s1159, 4096
        $region60: #{tpu_custom_call.1} parent=55 // pred_fallthru
          _
      $region56: #{tpu_custom_call.1} parent=5 // pred_fallthru
        _
    $region6: #{tpu_custom_call.1} parent=1 // loop_footer
      %s20 = sadd.s32 1, %s16
    $region7: #{tpu_custom_call.1} parent=1 // loop_footer_branch
      %15 = sbr.rel target = $region3
    $region8: #{tpu_custom_call.1} parent=1 // loop_exit
      _
    %1165 = vsyncpa [#allocation3], 1
    %s1166 = scalar_lea.sflag [#allocation3], 1
    %1167 = vsyncpa %s1166, 1

</llo_original>
